<compile_context>
chip_gen: v7x
topology: tpu7x:2x2x1
jax: 0.10.0
libtpu: 0.0.40
codegen_flags: <defaults>
</compile_context>

<pallas_src>
import jax
import jax.numpy as jnp
from jax import lax
from jax.experimental import pallas as pl
from jax.experimental.pallas import tpu as pltpu


def _round_up(x, m):
    return ((x + m - 1) // m) * m


# ----------------------------- fused forward kernel ---------------------------
def _make_kernel(*, T, Bp, Vp, NCp, H, Hp, G, LW,
                 R_WHH, R_BIH, R_BHH, R_FC1B, R_FC2B):
    TB = T * Bp

    def kernel(q_ref, meta_ref, fmisc_ref, emb_ref, gru_ref, fc_ref,
               out_ref, gi_scr):
        # q_ref:    (T*Bp, 1) int32   token ids, time-major
        # meta_ref: (Bp, LW)  int32   lane0 = q_len, lane1 = category id
        # fmisc_ref:(Bp, LW)  f32     [spas | crops | imgs | 0-pad]
        # emb_ref:  (Vp+NCp, LW) f32  rows [0:V) word emb, rows [Vp:Vp+NC) cat emb
        # gru_ref:  (R_BHH+8, G) f32  rows[0:LW)=W_ih(pad), [R_WHH:+H)=W_hh,
        #                             row R_BIH=b_ih, row R_BHH=b_hh; gates at
        #                             lane offsets 0/Hp/2Hp (vreg aligned)
        # fc_ref:   (R_FC2B+8, LW) f32 rows[0:LW)=fc1_w[h], [LW:2LW)=fc1_w[cat],
        #                             [2LW:3LW)=fc1_w[misc], [3LW:4LW)=fc2_w,
        #                             row R_FC1B=fc1_b, row R_FC2B=fc2_b
        # out_ref:  (Bp, LW) f32
        # gi_scr:   (T*Bp, G) f32 VMEM scratch (projected inputs, all steps)
        f32 = jnp.float32

        # ---- hoisted input projection: whole embedding table -> gate space ---
        proj = jnp.dot(emb_ref[0:Vp, :], gru_ref[0:LW, :],
                       preferred_element_type=f32) + gru_ref[R_BIH:R_BIH + 1, :]
        q_ids = q_ref[...]                                           # (TB, 1)
        onehot = (q_ids == lax.broadcasted_iota(jnp.int32, (TB, Vp), 1)
                  ).astype(f32)                                      # (TB, Vp)
        gi_scr[...] = jnp.dot(onehot, proj, preferred_element_type=f32)

        # ---- GRU recurrence: only h @ W_hh on the serial chain ---------------
        whh = gru_ref[R_WHH:R_WHH + H, :]                            # (H, G)
        bhh_b = jnp.broadcast_to(gru_ref[R_BHH:R_BHH + 1, :], (Bp, G))
        lens_b = jnp.broadcast_to(meta_ref[:, 0:1], (Bp, Hp))        # int32, hoisted
        h = jnp.zeros((Bp, Hp), f32)                                 # pad lanes stay 0
        for t in range(T):                                           # static unroll
            gi = gi_scr[t * Bp:(t + 1) * Bp, :]                      # (Bp, G)
            gh = jnp.dot(h[:, 0:H], whh, preferred_element_type=f32) + bhh_b
            rz = jax.nn.sigmoid(gi[:, 0:2 * Hp] + gh[:, 0:2 * Hp])   # fused r,z
            r = rz[:, 0:Hp]
            z = rz[:, Hp:2 * Hp]
            n = jnp.tanh(gi[:, 2 * Hp:] + r * gh[:, 2 * Hp:])
            h_new = (1.0 - z) * n + z * h
            h = jnp.where(lens_b > t, h_new, h)   # packed-seq final hidden

        # ---- category embedding via one-hot matmul ---------------------------
        cat_oh = (meta_ref[:, 1:2] ==
                  lax.broadcasted_iota(jnp.int32, (Bp, NCp), 1)).astype(f32)
        cate = jnp.dot(cat_oh, emb_ref[Vp:Vp + NCp, :],
                       preferred_element_type=f32)                   # (Bp, LW)

        # ---- fc1 as sum of per-segment dots (no concat/scratch), ReLU, fc2 ---
        hid = (jnp.dot(h, fc_ref[0:LW, :], preferred_element_type=f32)
               + jnp.dot(cate, fc_ref[LW:2 * LW, :], preferred_element_type=f32)
               + jnp.dot(fmisc_ref[...], fc_ref[2 * LW:3 * LW, :],
                         preferred_element_type=f32)
               + fc_ref[R_FC1B:R_FC1B + 1, :])
        hid = jnp.maximum(hid, 0.0)
        out_ref[...] = (jnp.dot(hid, fc_ref[3 * LW:4 * LW, :],
                                preferred_element_type=f32)
                        + fc_ref[R_FC2B:R_FC2B + 1, :])

    return kernel


# ----------------------------- wrapper ----------------------------------------
@jax.jit
def oracle_forward(params, questions, q_lens, imgs, crops, cats, spas):
    f32 = jnp.float32
    B, T = questions.shape
    V, E = params["word_emb"].shape
    NCt, CD = params["cat_emb"].shape
    H = params["gru_w_hh"].shape[0]
    fc_dim, MLP = params["fc1_w"].shape
    n_out = params["fc2_w"].shape[1]
    S, CR, IM = spas.shape[1], crops.shape[1], imgs.shape[1]
    MISC = S + CR + IM
    assert fc_dim == H + CD + MISC

    LW = 128                      # lane width of every padded slab
    Hp = 128                      # per-gate lane pad (== LW)
    G = 3 * Hp
    Bp = max(8, _round_up(B, 8))  # batch padded to full f32 sublane tile
    TB = T * Bp
    Vp = _round_up(V, 8)
    NCp = _round_up(NCt, 8)
    assert max(E, H, CD, MISC, MLP, n_out) <= LW

    # ---- token ids, time-major (padded rows use token 0, masked via lens=0) --
    q_p = jnp.zeros((Bp, T), jnp.int32).at[:B].set(questions.astype(jnp.int32))
    q_tm = q_p.T.reshape(TB, 1)

    # ---- int metadata slab: lane0 = length, lane1 = category ----------------
    meta = jnp.zeros((Bp, LW), jnp.int32)
    meta = meta.at[:B, 0].set(q_lens.astype(jnp.int32))
    meta = meta.at[:B, 1].set(cats.astype(jnp.int32))

    # ---- float misc slab: [spas | crops | imgs | 0-pad] ----------------------
    fmisc = jnp.zeros((Bp, LW), f32)
    fmisc = fmisc.at[:B, 0:S].set(spas.astype(f32))
    fmisc = fmisc.at[:B, S:S + CR].set(crops.astype(f32))
    fmisc = fmisc.at[:B, S + CR:MISC].set(imgs.astype(f32))

    # ---- embedding slab ------------------------------------------------------
    emb = jnp.zeros((Vp + NCp, LW), f32)
    emb = emb.at[0:V, 0:E].set(params["word_emb"].astype(f32))
    emb = emb.at[Vp:Vp + NCt, 0:CD].set(params["cat_emb"].astype(f32))

    # ---- GRU slab: gates padded to 128 lanes each (vreg-aligned slices) ------
    def gate_pad(w):  # (K, 3H) -> (K, G), gates at col offsets 0 / Hp / 2Hp
        out = jnp.zeros((w.shape[0], G), f32)
        out = out.at[:, 0:H].set(w[:, 0:H])
        out = out.at[:, Hp:Hp + H].set(w[:, H:2 * H])
        out = out.at[:, 2 * Hp:2 * Hp + H].set(w[:, 2 * H:3 * H])
        return out

    R_WHH = LW
    R_BIH = LW + _round_up(H, 8)
    R_BHH = R_BIH + 8
    gru = jnp.zeros((R_BHH + 8, G), f32)
    gru = gru.at[0:E].set(gate_pad(params["gru_w_ih"].astype(f32)))
    gru = gru.at[R_WHH:R_WHH + H].set(gate_pad(params["gru_w_hh"].astype(f32)))
    gru = gru.at[R_BIH].set(gate_pad(params["gru_b_ih"].astype(f32)[None])[0])
    gru = gru.at[R_BHH].set(gate_pad(params["gru_b_hh"].astype(f32)[None])[0])

    # ---- MLP slab: fc1_w pre-split by feature segment, fc2_w, biases ---------
    R_FC1B = 4 * LW
    R_FC2B = R_FC1B + 8
    fcs = jnp.zeros((R_FC2B + 8, LW), f32)
    fcs = fcs.at[0:H, 0:MLP].set(params["fc1_w"][0:H].astype(f32))
    fcs = fcs.at[LW:LW + CD, 0:MLP].set(params["fc1_w"][H:H + CD].astype(f32))
    fcs = fcs.at[2 * LW:2 * LW + MISC, 0:MLP].set(params["fc1_w"][H + CD:].astype(f32))
    fcs = fcs.at[3 * LW:3 * LW + MLP, 0:n_out].set(params["fc2_w"].astype(f32))
    fcs = fcs.at[R_FC1B, 0:MLP].set(params["fc1_b"].astype(f32))
    fcs = fcs.at[R_FC2B, 0:n_out].set(params["fc2_b"].astype(f32))

    kernel = _make_kernel(T=T, Bp=Bp, Vp=Vp, NCp=NCp, H=H, Hp=Hp, G=G, LW=LW,
                          R_WHH=R_WHH, R_BIH=R_BIH, R_BHH=R_BHH,
                          R_FC1B=R_FC1B, R_FC2B=R_FC2B)

    flops = 2 * (Vp * LW * G + TB * Vp * G + T * Bp * H * G
                 + Bp * NCp * LW + 4 * Bp * LW * LW)
    bytes_accessed = 4 * (q_tm.size + meta.size + fmisc.size + emb.size
                          + gru.size + fcs.size + Bp * LW)
    vmem = pl.BlockSpec(memory_space=pltpu.MemorySpace.VMEM)

    out = pl.pallas_call(
        kernel,
        out_shape=jax.ShapeDtypeStruct((Bp, LW), f32),
        in_specs=[vmem] * 6,
        out_specs=vmem,
        scratch_shapes=[pltpu.VMEM((TB, G), f32)],
        cost_estimate=pl.CostEstimate(flops=flops,
                                      transcendentals=T * Bp * G,
                                      bytes_accessed=bytes_accessed),
    )(q_tm, meta, fmisc, emb, gru, fcs)
    return out[:B, :n_out]


# pure-JAX reference (same math) for a self-consistency check
def oracle_forward_ref(params, questions, q_lens, imgs, crops, cats, spas):
    emb = jnp.take(params["word_emb"], questions, axis=0)
    B, T, E = emb.shape
    H = params["gru_w_hh"].shape[0]
    h = jnp.zeros((B, H), jnp.float32)
    for t in range(T):
        x_t = emb[:, t, :]
        gi = x_t @ params["gru_w_ih"] + params["gru_b_ih"]
        gh = h @ params["gru_w_hh"] + params["gru_b_hh"]
        r = jax.nn.sigmoid(gi[:, :H] + gh[:, :H])
        z = jax.nn.sigmoid(gi[:, H:2 * H] + gh[:, H:2 * H])
        n = jnp.tanh(gi[:, 2 * H:] + r * gh[:, 2 * H:])
        h_new = (1.0 - z) * n + z * h
        mask = (q_lens[:, None] > t).astype(jnp.float32)
        h = mask * h_new + (1.0 - mask) * h
    cate = jnp.take(params["cat_emb"], cats, axis=0)
    feat = jnp.concatenate([h, cate, spas, crops, imgs], axis=1)
    hid = jnp.maximum(feat @ params["fc1_w"] + params["fc1_b"], 0.0)
    return hid @ params["fc2_w"] + params["fc2_b"]


# ----------------------------- main -------------------------------------------
if __name__ == "__main__":
    # opt (all feature flags enabled)
    word_num = 20
    embedding_dim = 32        # E
    n_category = 4
    category_embed_dim = 16   # Cdim
    hidden = 32               # H
    image_dim = 32
    crop_dim = 32
    mlp_hidden = 32
    num_classes = 3
    B, T = 2, 8
    fc_dim = hidden + category_embed_dim + 8 + image_dim + crop_dim  # 120

    key = jax.random.PRNGKey(0)
    ks = jax.random.split(key, 16)

    params = {
        # embeddings: normal(0, 0.1) as in the PyTorch __init__
        "word_emb": 0.1 * jax.random.normal(ks[0], (word_num, embedding_dim), jnp.float32),
        "cat_emb": 0.1 * jax.random.normal(ks[1], (n_category + 1, category_embed_dim), jnp.float32),
        # GRU weights, gate order [r | z | n]
        "gru_w_ih": 0.1 * jax.random.normal(ks[2], (embedding_dim, 3 * hidden), jnp.float32),
        "gru_w_hh": 0.1 * jax.random.normal(ks[3], (hidden, 3 * hidden), jnp.float32),
        "gru_b_ih": 0.1 * jax.random.normal(ks[4], (3 * hidden,), jnp.float32),
        "gru_b_hh": 0.1 * jax.random.normal(ks[5], (3 * hidden,), jnp.float32),
        # MLP head
        "fc1_w": 0.1 * jax.random.normal(ks[6], (fc_dim, mlp_hidden), jnp.float32),
        "fc1_b": 0.1 * jax.random.normal(ks[7], (mlp_hidden,), jnp.float32),
        "fc2_w": 0.1 * jax.random.normal(ks[8], (mlp_hidden, num_classes), jnp.float32),
        "fc2_b": 0.1 * jax.random.normal(ks[9], (num_classes,), jnp.float32),
    }

    # deterministic example batch
    questions = jax.random.randint(ks[10], (B, T), 0, word_num, jnp.int32)
    q_lens = jnp.array([T, 5], jnp.int32)
    imgs = jax.random.normal(ks[11], (B, image_dim), jnp.float32)
    crops = jax.random.normal(ks[12], (B, crop_dim), jnp.float32)
    cats = jax.random.randint(ks[13], (B,), 0, n_category + 1, jnp.int32)
    spas = jax.random.normal(ks[14], (B, 8), jnp.float32)

    y = oracle_forward(params, questions, q_lens, imgs, crops, cats, spas)
    y = jax.block_until_ready(y)
    assert y.shape == (B, num_classes), y.shape

    y_ref = oracle_forward_ref(params, questions, q_lens, imgs, crops, cats, spas)
    assert jnp.allclose(y, y_ref, rtol=1e-3, atol=1e-3), (y, y_ref)

    print("KERNEL_OK")
</pallas_src>

<mosaic_0001>
module attributes {stable_mosaic.version = 11 : i64} {
  func.func @kernel(%arg0: memref<64x1xi32, #tpu.memory_space<vmem>>, %arg1: memref<8x128xi32, #tpu.memory_space<vmem>>, %arg2: memref<8x128xf32, #tpu.memory_space<vmem>>, %arg3: memref<32x128xf32, #tpu.memory_space<vmem>>, %arg4: memref<176x384xf32, #tpu.memory_space<vmem>>, %arg5: memref<528x128xf32, #tpu.memory_space<vmem>>, %arg6: memref<8x128xf32, #tpu.memory_space<vmem>>, %arg7: memref<64x384xf32, #tpu.memory_space<vmem>>) attributes {dimension_semantics = [], scalar_prefetch = 0 : i64, scratch_operands = 1 : i64, tpu.core_type = #tpu.core_type<tc>} {
    %c0 = arith.constant 0 : index
    %c0_0 = arith.constant 0 : index
    %0 = vector.load %arg3[%c0, %c0_0] : memref<32x128xf32, #tpu.memory_space<vmem>>, vector<24x128xf32>
    %c0_1 = arith.constant 0 : index
    %c0_2 = arith.constant 0 : index
    %1 = vector.load %arg4[%c0_1, %c0_2] : memref<176x384xf32, #tpu.memory_space<vmem>>, vector<128x384xf32>
    %cst = arith.constant dense<0.000000e+00> : vector<24x384xf32>
    %2 = tpu.matmul %0, %1, %cst {dimension_numbers = #tpu.dot_dimension_numbers<[1], [0], [0], [1], [0, 0, 1, 1], [], []>} : vector<24x128xf32>, vector<128x384xf32>, vector<24x384xf32> -> vector<24x384xf32>
    %c160 = arith.constant 160 : index
    %c0_3 = arith.constant 0 : index
    %3 = vector.load %arg4[%c160, %c0_3] : memref<176x384xf32, #tpu.memory_space<vmem>>, vector<1x384xf32>
    %4 = vector.broadcast %3 : vector<1x384xf32> to vector<24x384xf32>
    %5 = arith.addf %2, %4 : vector<24x384xf32>
    %c0_4 = arith.constant 0 : index
    %c0_5 = arith.constant 0 : index
    %6 = vector.load %arg0[%c0_4, %c0_5] : memref<64x1xi32, #tpu.memory_space<vmem>>, vector<64x1xi32>
    %7 = tpu.iota {dimensions = array<i32: 1>} : vector<64x24xi32>
    %8 = vector.broadcast %6 : vector<64x1xi32> to vector<64x24xi32>
    %9 = arith.cmpi eq, %8, %7 : vector<64x24xi32>
    %10 = arith.extui %9 : vector<64x24xi1> to vector<64x24xi32>
    %11 = arith.sitofp %10 : vector<64x24xi32> to vector<64x24xf32>
    %cst_6 = arith.constant dense<0.000000e+00> : vector<64x384xf32>
    %12 = tpu.matmul %11, %5, %cst_6 {dimension_numbers = #tpu.dot_dimension_numbers<[1], [0], [0], [1], [0, 0, 1, 1], [], []>} : vector<64x24xf32>, vector<24x384xf32>, vector<64x384xf32> -> vector<64x384xf32>
    %c0_7 = arith.constant 0 : index
    %c0_8 = arith.constant 0 : index
    %13 = vector.load %arg7[%c0_7, %c0_8] : memref<64x384xf32, #tpu.memory_space<vmem>>, vector<64x384xf32>
    tpu.vector_store %arg7[%c0_7, %c0_8], %12 {strides = array<i32>} : memref<64x384xf32, #tpu.memory_space<vmem>>, vector<64x384xf32>,
    %c128 = arith.constant 128 : index
    %c0_9 = arith.constant 0 : index
    %14 = vector.load %arg4[%c128, %c0_9] : memref<176x384xf32, #tpu.memory_space<vmem>>, vector<32x384xf32>
    %c168 = arith.constant 168 : index
    %c0_10 = arith.constant 0 : index
    %15 = vector.load %arg4[%c168, %c0_10] : memref<176x384xf32, #tpu.memory_space<vmem>>, vector<1x384xf32>
    %16 = vector.shape_cast %15 : vector<1x384xf32> to vector<1x384xf32>
    %17 = vector.broadcast %16 : vector<1x384xf32> to vector<8x384xf32>
    %c0_11 = arith.constant 0 : index
    %c0_12 = arith.constant 0 : index
    %18 = vector.load %arg1[%c0_11, %c0_12] : memref<8x128xi32, #tpu.memory_space<vmem>>, vector<8x1xi32>
    %19 = vector.shape_cast %18 : vector<8x1xi32> to vector<8x1xi32>
    %20 = vector.broadcast %19 : vector<8x1xi32> to vector<8x128xi32>
    %cst_13 = arith.constant 0.000000e+00 : f32
    %21 = vector.broadcast %cst_13 : f32 to vector<8x128xf32>
    %c0_14 = arith.constant 0 : index
    %c0_15 = arith.constant 0 : index
    %22 = vector.load %arg7[%c0_14, %c0_15] : memref<64x384xf32, #tpu.memory_space<vmem>>, vector<8x384xf32>
    %23 = vector.extract_strided_slice %21 {offsets = [0, 0], sizes = [8, 32], strides = [1, 1]} : vector<8x128xf32> to vector<8x32xf32>
    %cst_16 = arith.constant dense<0.000000e+00> : vector<8x384xf32>
    %24 = tpu.matmul %23, %14, %cst_16 {dimension_numbers = #tpu.dot_dimension_numbers<[1], [0], [0], [1], [0, 0, 1, 1], [], []>} : vector<8x32xf32>, vector<32x384xf32>, vector<8x384xf32> -> vector<8x384xf32>
    %25 = arith.addf %24, %17 : vector<8x384xf32>
    %26 = vector.extract_strided_slice %22 {offsets = [0, 0], sizes = [8, 256], strides = [1, 1]} : vector<8x384xf32> to vector<8x256xf32>
    %27 = vector.extract_strided_slice %25 {offsets = [0, 0], sizes = [8, 256], strides = [1, 1]} : vector<8x384xf32> to vector<8x256xf32>
    %28 = arith.addf %26, %27 : vector<8x256xf32>
    %29 = arith.negf %28 : vector<8x256xf32>
    %30 = math.exp %29 : vector<8x256xf32>
    %cst_17 = arith.constant 1.000000e+00 : f32
    %31 = vector.broadcast %cst_17 : f32 to vector<8x256xf32>
    %32 = arith.addf %31, %30 : vector<8x256xf32>
    %33 = arith.divf %31, %32 : vector<8x256xf32>
    %34 = vector.extract_strided_slice %33 {offsets = [0, 0], sizes = [8, 128], strides = [1, 1]} : vector<8x256xf32> to vector<8x128xf32>
    %35 = vector.extract_strided_slice %33 {offsets = [0, 128], sizes = [8, 128], strides = [1, 1]} : vector<8x256xf32> to vector<8x128xf32>
    %36 = vector.extract_strided_slice %22 {offsets = [0, 256], sizes = [8, 128], strides = [1, 1]} : vector<8x384xf32> to vector<8x128xf32>
    %37 = vector.extract_strided_slice %25 {offsets = [0, 256], sizes = [8, 128], strides = [1, 1]} : vector<8x384xf32> to vector<8x128xf32>
    %38 = arith.mulf %34, %37 : vector<8x128xf32>
    %39 = arith.addf %36, %38 : vector<8x128xf32>
    %40 = math.tanh %39 : vector<8x128xf32>
    %cst_18 = arith.constant 1.000000e+00 : f32
    %41 = vector.broadcast %cst_18 : f32 to vector<8x128xf32>
    %42 = arith.subf %41, %35 : vector<8x128xf32>
    %43 = arith.mulf %42, %40 : vector<8x128xf32>
    %44 = arith.mulf %35, %21 : vector<8x128xf32>
    %45 = arith.addf %43, %44 : vector<8x128xf32>
    %c0_i32 = arith.constant 0 : i32
    %46 = vector.broadcast %c0_i32 : i32 to vector<8x128xi32>
    %47 = arith.cmpi sgt, %20, %46 : vector<8x128xi32>
    %48 = arith.select %47, %45, %21 : vector<8x128xi1>, vector<8x128xf32>
    %c8 = arith.constant 8 : index
    %c0_19 = arith.constant 0 : index
    %49 = vector.load %arg7[%c8, %c0_19] : memref<64x384xf32, #tpu.memory_space<vmem>>, vector<8x384xf32>
    %50 = vector.extract_strided_slice %48 {offsets = [0, 0], sizes = [8, 32], strides = [1, 1]} : vector<8x128xf32> to vector<8x32xf32>
    %cst_20 = arith.constant dense<0.000000e+00> : vector<8x384xf32>
    %51 = tpu.matmul %50, %14, %cst_20 {dimension_numbers = #tpu.dot_dimension_numbers<[1], [0], [0], [1], [0, 0, 1, 1], [], []>} : vector<8x32xf32>, vector<32x384xf32>, vector<8x384xf32> -> vector<8x384xf32>
    %52 = arith.addf %51, %17 : vector<8x384xf32>
    %53 = vector.extract_strided_slice %49 {offsets = [0, 0], sizes = [8, 256], strides = [1, 1]} : vector<8x384xf32> to vector<8x256xf32>
    %54 = vector.extract_strided_slice %52 {offsets = [0, 0], sizes = [8, 256], strides = [1, 1]} : vector<8x384xf32> to vector<8x256xf32>
    %55 = arith.addf %53, %54 : vector<8x256xf32>
    %56 = arith.negf %55 : vector<8x256xf32>
    %57 = math.exp %56 : vector<8x256xf32>
    %cst_21 = arith.constant 1.000000e+00 : f32
    %58 = vector.broadcast %cst_21 : f32 to vector<8x256xf32>
    %59 = arith.addf %58, %57 : vector<8x256xf32>
    %60 = arith.divf %58, %59 : vector<8x256xf32>
    %61 = vector.extract_strided_slice %60 {offsets = [0, 0], sizes = [8, 128], strides = [1, 1]} : vector<8x256xf32> to vector<8x128xf32>
    %62 = vector.extract_strided_slice %60 {offsets = [0, 128], sizes = [8, 128], strides = [1, 1]} : vector<8x256xf32> to vector<8x128xf32>
    %63 = vector.extract_strided_slice %49 {offsets = [0, 256], sizes = [8, 128], strides = [1, 1]} : vector<8x384xf32> to vector<8x128xf32>
    %64 = vector.extract_strided_slice %52 {offsets = [0, 256], sizes = [8, 128], strides = [1, 1]} : vector<8x384xf32> to vector<8x128xf32>
    %65 = arith.mulf %61, %64 : vector<8x128xf32>
    %66 = arith.addf %63, %65 : vector<8x128xf32>
    %67 = math.tanh %66 : vector<8x128xf32>
    %cst_22 = arith.constant 1.000000e+00 : f32
    %68 = vector.broadcast %cst_22 : f32 to vector<8x128xf32>
    %69 = arith.subf %68, %62 : vector<8x128xf32>
    %70 = arith.mulf %69, %67 : vector<8x128xf32>
    %71 = arith.mulf %62, %48 : vector<8x128xf32>
    %72 = arith.addf %70, %71 : vector<8x128xf32>
    %c1_i32 = arith.constant 1 : i32
    %73 = vector.broadcast %c1_i32 : i32 to vector<8x128xi32>
    %74 = arith.cmpi sgt, %20, %73 : vector<8x128xi32>
    %75 = arith.select %74, %72, %48 : vector<8x128xi1>, vector<8x128xf32>
    %c16 = arith.constant 16 : index
    %c0_23 = arith.constant 0 : index
    %76 = vector.load %arg7[%c16, %c0_23] : memref<64x384xf32, #tpu.memory_space<vmem>>, vector<8x384xf32>
    %77 = vector.extract_strided_slice %75 {offsets = [0, 0], sizes = [8, 32], strides = [1, 1]} : vector<8x128xf32> to vector<8x32xf32>
    %cst_24 = arith.constant dense<0.000000e+00> : vector<8x384xf32>
    %78 = tpu.matmul %77, %14, %cst_24 {dimension_numbers = #tpu.dot_dimension_numbers<[1], [0], [0], [1], [0, 0, 1, 1], [], []>} : vector<8x32xf32>, vector<32x384xf32>, vector<8x384xf32> -> vector<8x384xf32>
    %79 = arith.addf %78, %17 : vector<8x384xf32>
    %80 = vector.extract_strided_slice %76 {offsets = [0, 0], sizes = [8, 256], strides = [1, 1]} : vector<8x384xf32> to vector<8x256xf32>
    %81 = vector.extract_strided_slice %79 {offsets = [0, 0], sizes = [8, 256], strides = [1, 1]} : vector<8x384xf32> to vector<8x256xf32>
    %82 = arith.addf %80, %81 : vector<8x256xf32>
    %83 = arith.negf %82 : vector<8x256xf32>
    %84 = math.exp %83 : vector<8x256xf32>
    %cst_25 = arith.constant 1.000000e+00 : f32
    %85 = vector.broadcast %cst_25 : f32 to vector<8x256xf32>
    %86 = arith.addf %85, %84 : vector<8x256xf32>
    %87 = arith.divf %85, %86 : vector<8x256xf32>
    %88 = vector.extract_strided_slice %87 {offsets = [0, 0], sizes = [8, 128], strides = [1, 1]} : vector<8x256xf32> to vector<8x128xf32>
    %89 = vector.extract_strided_slice %87 {offsets = [0, 128], sizes = [8, 128], strides = [1, 1]} : vector<8x256xf32> to vector<8x128xf32>
    %90 = vector.extract_strided_slice %76 {offsets = [0, 256], sizes = [8, 128], strides = [1, 1]} : vector<8x384xf32> to vector<8x128xf32>
    %91 = vector.extract_strided_slice %79 {offsets = [0, 256], sizes = [8, 128], strides = [1, 1]} : vector<8x384xf32> to vector<8x128xf32>
    %92 = arith.mulf %88, %91 : vector<8x128xf32>
    %93 = arith.addf %90, %92 : vector<8x128xf32>
    %94 = math.tanh %93 : vector<8x128xf32>
    %cst_26 = arith.constant 1.000000e+00 : f32
    %95 = vector.broadcast %cst_26 : f32 to vector<8x128xf32>
    %96 = arith.subf %95, %89 : vector<8x128xf32>
    %97 = arith.mulf %96, %94 : vector<8x128xf32>
    %98 = arith.mulf %89, %75 : vector<8x128xf32>
    %99 = arith.addf %97, %98 : vector<8x128xf32>
    %c2_i32 = arith.constant 2 : i32
    %100 = vector.broadcast %c2_i32 : i32 to vector<8x128xi32>
    %101 = arith.cmpi sgt, %20, %100 : vector<8x128xi32>
    %102 = arith.select %101, %99, %75 : vector<8x128xi1>, vector<8x128xf32>
    %c24 = arith.constant 24 : index
    %c0_27 = arith.constant 0 : index
    %103 = vector.load %arg7[%c24, %c0_27] : memref<64x384xf32, #tpu.memory_space<vmem>>, vector<8x384xf32>
    %104 = vector.extract_strided_slice %102 {offsets = [0, 0], sizes = [8, 32], strides = [1, 1]} : vector<8x128xf32> to vector<8x32xf32>
    %cst_28 = arith.constant dense<0.000000e+00> : vector<8x384xf32>
    %105 = tpu.matmul %104, %14, %cst_28 {dimension_numbers = #tpu.dot_dimension_numbers<[1], [0], [0], [1], [0, 0, 1, 1], [], []>} : vector<8x32xf32>, vector<32x384xf32>, vector<8x384xf32> -> vector<8x384xf32>
    %106 = arith.addf %105, %17 : vector<8x384xf32>
    %107 = vector.extract_strided_slice %103 {offsets = [0, 0], sizes = [8, 256], strides = [1, 1]} : vector<8x384xf32> to vector<8x256xf32>
    %108 = vector.extract_strided_slice %106 {offsets = [0, 0], sizes = [8, 256], strides = [1, 1]} : vector<8x384xf32> to vector<8x256xf32>
    %109 = arith.addf %107, %108 : vector<8x256xf32>
    %110 = arith.negf %109 : vector<8x256xf32>
    %111 = math.exp %110 : vector<8x256xf32>
    %cst_29 = arith.constant 1.000000e+00 : f32
    %112 = vector.broadcast %cst_29 : f32 to vector<8x256xf32>
    %113 = arith.addf %112, %111 : vector<8x256xf32>
    %114 = arith.divf %112, %113 : vector<8x256xf32>
    %115 = vector.extract_strided_slice %114 {offsets = [0, 0], sizes = [8, 128], strides = [1, 1]} : vector<8x256xf32> to vector<8x128xf32>
    %116 = vector.extract_strided_slice %114 {offsets = [0, 128], sizes = [8, 128], strides = [1, 1]} : vector<8x256xf32> to vector<8x128xf32>
    %117 = vector.extract_strided_slice %103 {offsets = [0, 256], sizes = [8, 128], strides = [1, 1]} : vector<8x384xf32> to vector<8x128xf32>
    %118 = vector.extract_strided_slice %106 {offsets = [0, 256], sizes = [8, 128], strides = [1, 1]} : vector<8x384xf32> to vector<8x128xf32>
    %119 = arith.mulf %115, %118 : vector<8x128xf32>
    %120 = arith.addf %117, %119 : vector<8x128xf32>
    %121 = math.tanh %120 : vector<8x128xf32>
    %cst_30 = arith.constant 1.000000e+00 : f32
    %122 = vector.broadcast %cst_30 : f32 to vector<8x128xf32>
    %123 = arith.subf %122, %116 : vector<8x128xf32>
    %124 = arith.mulf %123, %121 : vector<8x128xf32>
    %125 = arith.mulf %116, %102 : vector<8x128xf32>
    %126 = arith.addf %124, %125 : vector<8x128xf32>
    %c3_i32 = arith.constant 3 : i32
    %127 = vector.broadcast %c3_i32 : i32 to vector<8x128xi32>
    %128 = arith.cmpi sgt, %20, %127 : vector<8x128xi32>
    %129 = arith.select %128, %126, %102 : vector<8x128xi1>, vector<8x128xf32>
    %c32 = arith.constant 32 : index
    %c0_31 = arith.constant 0 : index
    %130 = vector.load %arg7[%c32, %c0_31] : memref<64x384xf32, #tpu.memory_space<vmem>>, vector<8x384xf32>
    %131 = vector.extract_strided_slice %129 {offsets = [0, 0], sizes = [8, 32], strides = [1, 1]} : vector<8x128xf32> to vector<8x32xf32>
    %cst_32 = arith.constant dense<0.000000e+00> : vector<8x384xf32>
    %132 = tpu.matmul %131, %14, %cst_32 {dimension_numbers = #tpu.dot_dimension_numbers<[1], [0], [0], [1], [0, 0, 1, 1], [], []>} : vector<8x32xf32>, vector<32x384xf32>, vector<8x384xf32> -> vector<8x384xf32>
    %133 = arith.addf %132, %17 : vector<8x384xf32>
    %134 = vector.extract_strided_slice %130 {offsets = [0, 0], sizes = [8, 256], strides = [1, 1]} : vector<8x384xf32> to vector<8x256xf32>
    %135 = vector.extract_strided_slice %133 {offsets = [0, 0], sizes = [8, 256], strides = [1, 1]} : vector<8x384xf32> to vector<8x256xf32>
    %136 = arith.addf %134, %135 : vector<8x256xf32>
    %137 = arith.negf %136 : vector<8x256xf32>
    %138 = math.exp %137 : vector<8x256xf32>
    %cst_33 = arith.constant 1.000000e+00 : f32
    %139 = vector.broadcast %cst_33 : f32 to vector<8x256xf32>
    %140 = arith.addf %139, %138 : vector<8x256xf32>
    %141 = arith.divf %139, %140 : vector<8x256xf32>
    %142 = vector.extract_strided_slice %141 {offsets = [0, 0], sizes = [8, 128], strides = [1, 1]} : vector<8x256xf32> to vector<8x128xf32>
    %143 = vector.extract_strided_slice %141 {offsets = [0, 128], sizes = [8, 128], strides = [1, 1]} : vector<8x256xf32> to vector<8x128xf32>
    %144 = vector.extract_strided_slice %130 {offsets = [0, 256], sizes = [8, 128], strides = [1, 1]} : vector<8x384xf32> to vector<8x128xf32>
    %145 = vector.extract_strided_slice %133 {offsets = [0, 256], sizes = [8, 128], strides = [1, 1]} : vector<8x384xf32> to vector<8x128xf32>
    %146 = arith.mulf %142, %145 : vector<8x128xf32>
    %147 = arith.addf %144, %146 : vector<8x128xf32>
    %148 = math.tanh %147 : vector<8x128xf32>
    %cst_34 = arith.constant 1.000000e+00 : f32
    %149 = vector.broadcast %cst_34 : f32 to vector<8x128xf32>
    %150 = arith.subf %149, %143 : vector<8x128xf32>
    %151 = arith.mulf %150, %148 : vector<8x128xf32>
    %152 = arith.mulf %143, %129 : vector<8x128xf32>
    %153 = arith.addf %151, %152 : vector<8x128xf32>
    %c4_i32 = arith.constant 4 : i32
    %154 = vector.broadcast %c4_i32 : i32 to vector<8x128xi32>
    %155 = arith.cmpi sgt, %20, %154 : vector<8x128xi32>
    %156 = arith.select %155, %153, %129 : vector<8x128xi1>, vector<8x128xf32>
    %c40 = arith.constant 40 : index
    %c0_35 = arith.constant 0 : index
    %157 = vector.load %arg7[%c40, %c0_35] : memref<64x384xf32, #tpu.memory_space<vmem>>, vector<8x384xf32>
    %158 = vector.extract_strided_slice %156 {offsets = [0, 0], sizes = [8, 32], strides = [1, 1]} : vector<8x128xf32> to vector<8x32xf32>
    %cst_36 = arith.constant dense<0.000000e+00> : vector<8x384xf32>
    %159 = tpu.matmul %158, %14, %cst_36 {dimension_numbers = #tpu.dot_dimension_numbers<[1], [0], [0], [1], [0, 0, 1, 1], [], []>} : vector<8x32xf32>, vector<32x384xf32>, vector<8x384xf32> -> vector<8x384xf32>
    %160 = arith.addf %159, %17 : vector<8x384xf32>
    %161 = vector.extract_strided_slice %157 {offsets = [0, 0], sizes = [8, 256], strides = [1, 1]} : vector<8x384xf32> to vector<8x256xf32>
    %162 = vector.extract_strided_slice %160 {offsets = [0, 0], sizes = [8, 256], strides = [1, 1]} : vector<8x384xf32> to vector<8x256xf32>
    %163 = arith.addf %161, %162 : vector<8x256xf32>
    %164 = arith.negf %163 : vector<8x256xf32>
    %165 = math.exp %164 : vector<8x256xf32>
    %cst_37 = arith.constant 1.000000e+00 : f32
    %166 = vector.broadcast %cst_37 : f32 to vector<8x256xf32>
    %167 = arith.addf %166, %165 : vector<8x256xf32>
    %168 = arith.divf %166, %167 : vector<8x256xf32>
    %169 = vector.extract_strided_slice %168 {offsets = [0, 0], sizes = [8, 128], strides = [1, 1]} : vector<8x256xf32> to vector<8x128xf32>
    %170 = vector.extract_strided_slice %168 {offsets = [0, 128], sizes = [8, 128], strides = [1, 1]} : vector<8x256xf32> to vector<8x128xf32>
    %171 = vector.extract_strided_slice %157 {offsets = [0, 256], sizes = [8, 128], strides = [1, 1]} : vector<8x384xf32> to vector<8x128xf32>
    %172 = vector.extract_strided_slice %160 {offsets = [0, 256], sizes = [8, 128], strides = [1, 1]} : vector<8x384xf32> to vector<8x128xf32>
    %173 = arith.mulf %169, %172 : vector<8x128xf32>
    %174 = arith.addf %171, %173 : vector<8x128xf32>
    %175 = math.tanh %174 : vector<8x128xf32>
    %cst_38 = arith.constant 1.000000e+00 : f32
    %176 = vector.broadcast %cst_38 : f32 to vector<8x128xf32>
    %177 = arith.subf %176, %170 : vector<8x128xf32>
    %178 = arith.mulf %177, %175 : vector<8x128xf32>
    %179 = arith.mulf %170, %156 : vector<8x128xf32>
    %180 = arith.addf %178, %179 : vector<8x128xf32>
    %c5_i32 = arith.constant 5 : i32
    %181 = vector.broadcast %c5_i32 : i32 to vector<8x128xi32>
    %182 = arith.cmpi sgt, %20, %181 : vector<8x128xi32>
    %183 = arith.select %182, %180, %156 : vector<8x128xi1>, vector<8x128xf32>
    %c48 = arith.constant 48 : index
    %c0_39 = arith.constant 0 : index
    %184 = vector.load %arg7[%c48, %c0_39] : memref<64x384xf32, #tpu.memory_space<vmem>>, vector<8x384xf32>
    %185 = vector.extract_strided_slice %183 {offsets = [0, 0], sizes = [8, 32], strides = [1, 1]} : vector<8x128xf32> to vector<8x32xf32>
    %cst_40 = arith.constant dense<0.000000e+00> : vector<8x384xf32>
    %186 = tpu.matmul %185, %14, %cst_40 {dimension_numbers = #tpu.dot_dimension_numbers<[1], [0], [0], [1], [0, 0, 1, 1], [], []>} : vector<8x32xf32>, vector<32x384xf32>, vector<8x384xf32> -> vector<8x384xf32>
    %187 = arith.addf %186, %17 : vector<8x384xf32>
    %188 = vector.extract_strided_slice %184 {offsets = [0, 0], sizes = [8, 256], strides = [1, 1]} : vector<8x384xf32> to vector<8x256xf32>
    %189 = vector.extract_strided_slice %187 {offsets = [0, 0], sizes = [8, 256], strides = [1, 1]} : vector<8x384xf32> to vector<8x256xf32>
    %190 = arith.addf %188, %189 : vector<8x256xf32>
    %191 = arith.negf %190 : vector<8x256xf32>
    %192 = math.exp %191 : vector<8x256xf32>
    %cst_41 = arith.constant 1.000000e+00 : f32
    %193 = vector.broadcast %cst_41 : f32 to vector<8x256xf32>
    %194 = arith.addf %193, %192 : vector<8x256xf32>
    %195 = arith.divf %193, %194 : vector<8x256xf32>
    %196 = vector.extract_strided_slice %195 {offsets = [0, 0], sizes = [8, 128], strides = [1, 1]} : vector<8x256xf32> to vector<8x128xf32>
    %197 = vector.extract_strided_slice %195 {offsets = [0, 128], sizes = [8, 128], strides = [1, 1]} : vector<8x256xf32> to vector<8x128xf32>
    %198 = vector.extract_strided_slice %184 {offsets = [0, 256], sizes = [8, 128], strides = [1, 1]} : vector<8x384xf32> to vector<8x128xf32>
    %199 = vector.extract_strided_slice %187 {offsets = [0, 256], sizes = [8, 128], strides = [1, 1]} : vector<8x384xf32> to vector<8x128xf32>
    %200 = arith.mulf %196, %199 : vector<8x128xf32>
    %201 = arith.addf %198, %200 : vector<8x128xf32>
    %202 = math.tanh %201 : vector<8x128xf32>
    %cst_42 = arith.constant 1.000000e+00 : f32
    %203 = vector.broadcast %cst_42 : f32 to vector<8x128xf32>
    %204 = arith.subf %203, %197 : vector<8x128xf32>
    %205 = arith.mulf %204, %202 : vector<8x128xf32>
    %206 = arith.mulf %197, %183 : vector<8x128xf32>
    %207 = arith.addf %205, %206 : vector<8x128xf32>
    %c6_i32 = arith.constant 6 : i32
    %208 = vector.broadcast %c6_i32 : i32 to vector<8x128xi32>
    %209 = arith.cmpi sgt, %20, %208 : vector<8x128xi32>
    %210 = arith.select %209, %207, %183 : vector<8x128xi1>, vector<8x128xf32>
    %c56 = arith.constant 56 : index
    %c0_43 = arith.constant 0 : index
    %211 = vector.load %arg7[%c56, %c0_43] : memref<64x384xf32, #tpu.memory_space<vmem>>, vector<8x384xf32>
    %212 = vector.extract_strided_slice %210 {offsets = [0, 0], sizes = [8, 32], strides = [1, 1]} : vector<8x128xf32> to vector<8x32xf32>
    %cst_44 = arith.constant dense<0.000000e+00> : vector<8x384xf32>
    %213 = tpu.matmul %212, %14, %cst_44 {dimension_numbers = #tpu.dot_dimension_numbers<[1], [0], [0], [1], [0, 0, 1, 1], [], []>} : vector<8x32xf32>, vector<32x384xf32>, vector<8x384xf32> -> vector<8x384xf32>
    %214 = arith.addf %213, %17 : vector<8x384xf32>
    %215 = vector.extract_strided_slice %211 {offsets = [0, 0], sizes = [8, 256], strides = [1, 1]} : vector<8x384xf32> to vector<8x256xf32>
    %216 = vector.extract_strided_slice %214 {offsets = [0, 0], sizes = [8, 256], strides = [1, 1]} : vector<8x384xf32> to vector<8x256xf32>
    %217 = arith.addf %215, %216 : vector<8x256xf32>
    %218 = arith.negf %217 : vector<8x256xf32>
    %219 = math.exp %218 : vector<8x256xf32>
    %cst_45 = arith.constant 1.000000e+00 : f32
    %220 = vector.broadcast %cst_45 : f32 to vector<8x256xf32>
    %221 = arith.addf %220, %219 : vector<8x256xf32>
    %222 = arith.divf %220, %221 : vector<8x256xf32>
    %223 = vector.extract_strided_slice %222 {offsets = [0, 0], sizes = [8, 128], strides = [1, 1]} : vector<8x256xf32> to vector<8x128xf32>
    %224 = vector.extract_strided_slice %222 {offsets = [0, 128], sizes = [8, 128], strides = [1, 1]} : vector<8x256xf32> to vector<8x128xf32>
    %225 = vector.extract_strided_slice %211 {offsets = [0, 256], sizes = [8, 128], strides = [1, 1]} : vector<8x384xf32> to vector<8x128xf32>
    %226 = vector.extract_strided_slice %214 {offsets = [0, 256], sizes = [8, 128], strides = [1, 1]} : vector<8x384xf32> to vector<8x128xf32>
    %227 = arith.mulf %223, %226 : vector<8x128xf32>
    %228 = arith.addf %225, %227 : vector<8x128xf32>
    %229 = math.tanh %228 : vector<8x128xf32>
    %cst_46 = arith.constant 1.000000e+00 : f32
    %230 = vector.broadcast %cst_46 : f32 to vector<8x128xf32>
    %231 = arith.subf %230, %224 : vector<8x128xf32>
    %232 = arith.mulf %231, %229 : vector<8x128xf32>
    %233 = arith.mulf %224, %210 : vector<8x128xf32>
    %234 = arith.addf %232, %233 : vector<8x128xf32>
    %c7_i32 = arith.constant 7 : i32
    %235 = vector.broadcast %c7_i32 : i32 to vector<8x128xi32>
    %236 = arith.cmpi sgt, %20, %235 : vector<8x128xi32>
    %237 = arith.select %236, %234, %210 : vector<8x128xi1>, vector<8x128xf32>
    %c0_47 = arith.constant 0 : index
    %c1 = arith.constant 1 : index
    %238 = vector.load %arg1[%c0_47, %c1] : memref<8x128xi32, #tpu.memory_space<vmem>>, vector<8x1xi32>
    %239 = tpu.iota {dimensions = array<i32: 1>} : vector<8x8xi32>
    %240 = vector.broadcast %238 : vector<8x1xi32> to vector<8x8xi32>
    %241 = arith.cmpi eq, %240, %239 : vector<8x8xi32>
    %242 = arith.extui %241 : vector<8x8xi1> to vector<8x8xi32>
    %243 = arith.sitofp %242 : vector<8x8xi32> to vector<8x8xf32>
    %c24_48 = arith.constant 24 : index
    %c0_49 = arith.constant 0 : index
    %244 = vector.load %arg3[%c24_48, %c0_49] : memref<32x128xf32, #tpu.memory_space<vmem>>, vector<8x128xf32>
    %cst_50 = arith.constant dense<0.000000e+00> : vector<8x128xf32>
    %245 = tpu.matmul %243, %244, %cst_50 {dimension_numbers = #tpu.dot_dimension_numbers<[1], [0], [0], [1], [0, 0, 1, 1], [], []>} : vector<8x8xf32>, vector<8x128xf32>, vector<8x128xf32> -> vector<8x128xf32>
    %c0_51 = arith.constant 0 : index
    %c0_52 = arith.constant 0 : index
    %246 = vector.load %arg5[%c0_51, %c0_52] : memref<528x128xf32, #tpu.memory_space<vmem>>, vector<128x128xf32>
    %cst_53 = arith.constant dense<0.000000e+00> : vector<8x128xf32>
    %247 = tpu.matmul %237, %246, %cst_53 {dimension_numbers = #tpu.dot_dimension_numbers<[1], [0], [0], [1], [0, 0, 1, 1], [], []>} : vector<8x128xf32>, vector<128x128xf32>, vector<8x128xf32> -> vector<8x128xf32>
    %c128_54 = arith.constant 128 : index
    %c0_55 = arith.constant 0 : index
    %248 = vector.load %arg5[%c128_54, %c0_55] : memref<528x128xf32, #tpu.memory_space<vmem>>, vector<128x128xf32>
    %cst_56 = arith.constant dense<0.000000e+00> : vector<8x128xf32>
    %249 = tpu.matmul %245, %248, %cst_56 {dimension_numbers = #tpu.dot_dimension_numbers<[1], [0], [0], [1], [0, 0, 1, 1], [], []>} : vector<8x128xf32>, vector<128x128xf32>, vector<8x128xf32> -> vector<8x128xf32>
    %250 = arith.addf %247, %249 : vector<8x128xf32>
    %c0_57 = arith.constant 0 : index
    %c0_58 = arith.constant 0 : index
    %251 = vector.load %arg2[%c0_57, %c0_58] : memref<8x128xf32, #tpu.memory_space<vmem>>, vector<8x128xf32>
    %c256 = arith.constant 256 : index
    %c0_59 = arith.constant 0 : index
    %252 = vector.load %arg5[%c256, %c0_59] : memref<528x128xf32, #tpu.memory_space<vmem>>, vector<128x128xf32>
    %cst_60 = arith.constant dense<0.000000e+00> : vector<8x128xf32>
    %253 = tpu.matmul %251, %252, %cst_60 {dimension_numbers = #tpu.dot_dimension_numbers<[1], [0], [0], [1], [0, 0, 1, 1], [], []>} : vector<8x128xf32>, vector<128x128xf32>, vector<8x128xf32> -> vector<8x128xf32>
    %254 = arith.addf %250, %253 : vector<8x128xf32>
    %c512 = arith.constant 512 : index
    %c0_61 = arith.constant 0 : index
    %255 = vector.load %arg5[%c512, %c0_61] : memref<528x128xf32, #tpu.memory_space<vmem>>, vector<1x128xf32>
    %256 = vector.broadcast %255 : vector<1x128xf32> to vector<8x128xf32>
    %257 = arith.addf %254, %256 : vector<8x128xf32>
    %cst_62 = arith.constant 0.000000e+00 : f32
    %258 = vector.broadcast %cst_62 : f32 to vector<8x128xf32>
    %259 = arith.maximumf %257, %258 : vector<8x128xf32>
    %c384 = arith.constant 384 : index
    %c0_63 = arith.constant 0 : index
    %260 = vector.load %arg5[%c384, %c0_63] : memref<528x128xf32, #tpu.memory_space<vmem>>, vector<128x128xf32>
    %cst_64 = arith.constant dense<0.000000e+00> : vector<8x128xf32>
    %261 = tpu.matmul %259, %260, %cst_64 {dimension_numbers = #tpu.dot_dimension_numbers<[1], [0], [0], [1], [0, 0, 1, 1], [], []>} : vector<8x128xf32>, vector<128x128xf32>, vector<8x128xf32> -> vector<8x128xf32>
    %c520 = arith.constant 520 : index
    %c0_65 = arith.constant 0 : index
    %262 = vector.load %arg5[%c520, %c0_65] : memref<528x128xf32, #tpu.memory_space<vmem>>, vector<1x128xf32>
    %263 = vector.broadcast %262 : vector<1x128xf32> to vector<8x128xf32>
    %264 = arith.addf %261, %263 : vector<8x128xf32>
    %c0_66 = arith.constant 0 : index
    %c0_67 = arith.constant 0 : index
    %265 = vector.load %arg6[%c0_66, %c0_67] : memref<8x128xf32, #tpu.memory_space<vmem>>, vector<8x128xf32>
    tpu.vector_store %arg6[%c0_66, %c0_67], %264 {strides = array<i32>} : memref<8x128xf32, #tpu.memory_space<vmem>>, vector<8x128xf32>,
    return
  }
}

</mosaic_0001>

<llo_original>
// kernel: oracle_forward.1
$region0: #{oracle_forward.1}
  #allocation0 [shape = 'u32[]', space=smem, size = 0x4, offset = 0x4, fixed_abs, tag = 'smem constant byte address 0x4 - core index']
  #allocation1 [shape = 'u32[144,128]{1,0:T(1,128)}', space=vmem, size = 0x12000, scoped, tag = 'internal scratch']
  #allocation2 [shape = 'f32[64,384]{1,0:T(8,128)}', space=vmem, size = 0x18000, scoped, tag = 'scratch operand']
  %s0 = inlined_call_operand.vmem [shape: s32[64,1], index: 0, kind: input, shape index: {}]
  %s1 = inlined_call_operand.vmem [shape: s32[8,128], index: 1, kind: input, shape index: {}]
  %s2 = inlined_call_operand.vmem [shape: f32[8,128], index: 2, kind: input, shape index: {}]
  %s3 = inlined_call_operand.vmem [shape: f32[32,128], index: 3, kind: input, shape index: {}]
  %s4 = inlined_call_operand.vmem [shape: f32[176,384], index: 4, kind: input, shape index: {}]
  %s5 = inlined_call_operand.vmem [shape: f32[528,128], index: 5, kind: input, shape index: {}]
  %s6 = inlined_call_operand.vmem [shape: f32[8,128], index: 6, kind: output, shape index: {}]
  %s7 = sld [smem:[#allocation0]]
  $region34: #{oracle_forward.1} parent=0
    _
  %s9 = ssub.s32 1, %s7
  %s10 = scalar_select 0, %s9, %s7
  // Predicated region
  $region2: #{oracle_forward.1} parent=0 // pred_check
    _
  $region3: #{oracle_forward.1} parent=0 // pred_check_branch
    %12 = sbr.rel (0) target = $region5
  $region4: #{oracle_forward.1} parent=0 // pred_region
    _
  $region5: #{oracle_forward.1} parent=0 // pred_fallthru
    _
  // Predicated region
  $region6: #{oracle_forward.1} parent=0 // pred_check
    _
  $region7: #{oracle_forward.1} parent=0 // pred_check_branch
    %14 = sbr.rel (0) target = $region9
  $region8: #{oracle_forward.1} parent=0 // pred_region
    _
  $region9: #{oracle_forward.1} parent=0 // pred_fallthru
    _
  // Predicated region
  $region10: #{oracle_forward.1} parent=0 // pred_check
    _
  $region11: #{oracle_forward.1} parent=0 // pred_check_branch
    %16 = sbr.rel (0) target = $region13
  $region12: #{oracle_forward.1} parent=0 // pred_region
    _
  $region13: #{oracle_forward.1} parent=0 // pred_fallthru
    _
  // Predicated region
  $region14: #{oracle_forward.1} parent=0 // pred_check
    _
  $region15: #{oracle_forward.1} parent=0 // pred_check_branch
    %18 = sbr.rel (0) target = $region17
  $region16: #{oracle_forward.1} parent=0 // pred_region
    _
  $region17: #{oracle_forward.1} parent=0 // pred_fallthru
    _
  // Predicated region
  $region18: #{oracle_forward.1} parent=0 // pred_check
    _
  $region19: #{oracle_forward.1} parent=0 // pred_check_branch
    %20 = sbr.rel (0) target = $region21
  $region20: #{oracle_forward.1} parent=0 // pred_region
    _
  $region21: #{oracle_forward.1} parent=0 // pred_fallthru
    _
  // Predicated region
  $region22: #{oracle_forward.1} parent=0 // pred_check
    _
  $region23: #{oracle_forward.1} parent=0 // pred_check_branch
    %22 = sbr.rel (0) target = $region25
  $region24: #{oracle_forward.1} parent=0 // pred_region
    _
  $region25: #{oracle_forward.1} parent=0 // pred_fallthru
    _
  %v23 = vld [vmem:[%s3] sm:$0xff]
  %v24 = vld [vmem:[%s3 + $0x8] sm:$0xff]
  %v25 = vld [vmem:[%s3 + $0x10] sm:$0xff]
  %v26 = vld [vmem:[%s4] sm:$0xff]
  %v27 = vld [vmem:[%s4 + $0x8] sm:$0xff]
  %v28 = vld [vmem:[%s4 + $0x10] sm:$0xff]
  %v29 = vld [vmem:[%s4 + $0x18] sm:$0xff]
  %v30 = vld [vmem:[%s4 + $0x20] sm:$0xff]
  %v31 = vld [vmem:[%s4 + $0x28] sm:$0xff]
  %v32 = vld [vmem:[%s4 + $0x30] sm:$0xff]
  %v33 = vld [vmem:[%s4 + $0x38] sm:$0xff]
  %v34 = vld [vmem:[%s4 + $0x40] sm:$0xff]
  %v35 = vld [vmem:[%s4 + $0x48] sm:$0xff]
  %v36 = vld [vmem:[%s4 + $0x50] sm:$0xff]
  %v37 = vld [vmem:[%s4 + $0x58] sm:$0xff]
  %v38 = vld [vmem:[%s4 + $0x60] sm:$0xff]
  %v39 = vld [vmem:[%s4 + $0x68] sm:$0xff]
  %v40 = vld [vmem:[%s4 + $0x70] sm:$0xff]
  %v41 = vld [vmem:[%s4 + $0x78] sm:$0xff]
  %v42 = vld [vmem:[%s4 + $0x80] sm:$0xff]
  %v43 = vld [vmem:[%s4 + $0x88] sm:$0xff]
  %v44 = vld [vmem:[%s4 + $0x90] sm:$0xff]
  %v45 = vld [vmem:[%s4 + $0x98] sm:$0xff]
  %v46 = vld [vmem:[%s4 + $0xa0] sm:$0xff]
  %v47 = vld [vmem:[%s4 + $0xa8] sm:$0xff]
  %v48 = vld [vmem:[%s4 + $0xb0] sm:$0xff]
  %v49 = vld [vmem:[%s4 + $0xb8] sm:$0xff]
  %v50 = vld [vmem:[%s4 + $0xc0] sm:$0xff]
  %v51 = vld [vmem:[%s4 + $0xc8] sm:$0xff]
  %v52 = vld [vmem:[%s4 + $0xd0] sm:$0xff]
  %v53 = vld [vmem:[%s4 + $0xd8] sm:$0xff]
  %v54 = vld [vmem:[%s4 + $0xe0] sm:$0xff]
  %v55 = vld [vmem:[%s4 + $0xe8] sm:$0xff]
  %v56 = vld [vmem:[%s4 + $0xf0] sm:$0xff]
  %v57 = vld [vmem:[%s4 + $0xf8] sm:$0xff]
  %v58 = vld [vmem:[%s4 + $0x100] sm:$0xff]
  %v59 = vld [vmem:[%s4 + $0x108] sm:$0xff]
  %v60 = vld [vmem:[%s4 + $0x110] sm:$0xff]
  %v61 = vld [vmem:[%s4 + $0x118] sm:$0xff]
  %v62 = vld [vmem:[%s4 + $0x120] sm:$0xff]
  %v63 = vld [vmem:[%s4 + $0x128] sm:$0xff]
  %v64 = vld [vmem:[%s4 + $0x130] sm:$0xff]
  %v65 = vld [vmem:[%s4 + $0x138] sm:$0xff]
  %v66 = vld [vmem:[%s4 + $0x140] sm:$0xff]
  %v67 = vld [vmem:[%s4 + $0x148] sm:$0xff]
  %v68 = vld [vmem:[%s4 + $0x150] sm:$0xff]
  %v69 = vld [vmem:[%s4 + $0x158] sm:$0xff]
  %v70 = vld [vmem:[%s4 + $0x160] sm:$0xff]
  %v71 = vld [vmem:[%s4 + $0x168] sm:$0xff]
  %v72 = vld [vmem:[%s4 + $0x170] sm:$0xff]
  %v73 = vld [vmem:[%s4 + $0x178] sm:$0xff]
  %s74 = scalar_lea.vmem %s4, 480
  %v75 = vld [vmem:[%s74] ss:$8 sm:$0x7]
  %v77 = vlaneseq
  %v78 = vshrl.u32 %v77, 7
  %v79 = vsub.s32 0, %v78
  %v80 = vrot.slane %v75, %v79
  %v81 = vlaneseq
  %v82 = vshrl.u32 %v81, 7
  %v83 = vsub.s32 1, %v82
  %v84 = vrot.slane %v75, %v83
  %v85 = vlaneseq
  %v86 = vshrl.u32 %v85, 7
  %v87 = vsub.s32 2, %v86
  %v88 = vrot.slane %v75, %v87
  %92 = vmatprep.subr.mxu0 %v27
  %93 = vmatpush1.msra.mxu0 %v26
  %94 = vmatprep.subr.mxu0 %v30
  %95 = vmatpush1.msra.mxu0 %v29
  %96 = vmatprep.subr.mxu0 %v33
  %97 = vmatpush1.msra.mxu0 %v32
  %98 = vmatprep.subr.mxu0 %v36
  %99 = vmatpush1.msra.mxu0 %v35
  %100 = vmatprep.subr.mxu0 %v39
  %101 = vmatpush1.msra.mxu0 %v38
  %102 = vmatprep.subr.mxu0 %v42
  %103 = vmatpush1.msra.mxu0 %v41
  %104 = vmatprep.subr.mxu0 %v45
  %105 = vmatpush1.msra.mxu0 %v44
  %106 = vmatprep.subr.mxu0 %v48
  %107 = vmatpush1.msra.mxu0 %v47
  %108 = vmatprep.subr.mxu0 %v51
  %109 = vmatpush1.msra.mxu0 %v50
  %110 = vmatprep.subr.mxu0 %v54
  %111 = vmatpush1.msra.mxu0 %v53
  %112 = vmatprep.subr.mxu0 %v57
  %113 = vmatpush1.msra.mxu0 %v56
  %114 = vmatprep.subr.mxu0 %v60
  %115 = vmatpush1.msra.mxu0 %v59
  %116 = vmatprep.subr.mxu0 %v63
  %117 = vmatpush1.msra.mxu0 %v62
  %118 = vmatprep.subr.mxu0 %v66
  %119 = vmatpush1.msra.mxu0 %v65
  %120 = vmatprep.subr.mxu0 %v69
  %121 = vmatpush1.msra.mxu0 %v68
  %122 = vmatprep.subr.mxu0 %v72
  %123 = vmatpush1.msra.mxu0 %v71
  %124 = vmatprep.subr.mxu0 0.0
  %125 = vmatpush1.msra.mxu0 0.0
  %126 = vmatprep.subr.mxu0 0.0
  %127 = vmatpush1.msra.mxu0 0.0
  %128 = vmatprep.subr.mxu0 0.0
  %129 = vmatpush1.msra.mxu0 0.0
  %130 = vmatprep.subr.mxu0 0.0
  %131 = vmatpush1.msra.mxu0 0.0
  %132 = vmatprep.subr.mxu0 0.0
  %133 = vmatpush1.msra.mxu0 0.0
  %134 = vmatprep.subr.mxu0 0.0
  %135 = vmatpush1.msra.mxu0 0.0
  %136 = vmatprep.subr.mxu0 0.0
  %137 = vmatpush1.msra.mxu0 0.0
  %138 = vmatprep.subr.mxu0 0.0
  %139 = vmatpush1.msra.mxu0 0.0
  %140 = vmatprep.subr.mxu0 0.0
  %141 = vmatpush1.msra.mxu0 0.0
  %142 = vmatprep.subr.mxu0 0.0
  %143 = vmatpush1.msra.mxu0 0.0
  %144 = vmatprep.subr.mxu0 0.0
  %145 = vmatpush1.msra.mxu0 0.0
  %146 = vmatprep.subr.mxu0 0.0
  %147 = vmatpush1.msra.mxu0 0.0
  %148 = vmatprep.subr.mxu0 0.0
  %149 = vmatpush1.msra.mxu0 0.0
  %150 = vmatprep.subr.mxu0 0.0
  %151 = vmatpush1.msra.mxu0 0.0
  %152 = vmatprep.subr.mxu0 0.0
  %153 = vmatpush1.msra.mxu0 0.0
  %154 = vmatprep.subr.mxu0 0.0
  %155 = vmatpush1.msra.mxu0 0.0
  %156 = vmatprep.mubr.f32.mxu0 0.0
  %157 = vmatmul.mubr.f32.gmra.mrb[0].mxu0 %v23
  %v158 = vpop.f32.mrb[0].mxu0
  %v159 = vadd.f32 %v80, %v158
  %v160 = vpop.f32.mrb[0].mxu0
  %v161 = vadd.f32 %v84, %v160
  %162 = vmatprep.mubr.f32.mxu0 0.0
  %163 = vmatmul.mubr.f32.gmra.mrb[0].mxu0 %v24
  %v164 = vpop.f32.mrb[0].mxu0
  %v165 = vadd.f32 %v80, %v164
  %v166 = vpop.f32.mrb[0].mxu0
  %v167 = vadd.f32 %v84, %v166
  %168 = vmatprep.mubr.f32.mxu0 0.0
  %169 = vmatmul.mubr.f32.gmra.mrb[0].mxu0 %v25
  %v170 = vpop.f32.mrb[0].mxu0
  %v171 = vadd.f32 %v80, %v170
  %v172 = vpop.f32.mrb[0].mxu0
  %v173 = vadd.f32 %v84, %v172
  %174 = vdwg.mxu0
  %175 = vmatprep.subr.mxu0 0.0
  %176 = vmatpush1.msra.mxu0 %v28
  %177 = vmatprep.subr.mxu0 0.0
  %178 = vmatpush1.msra.mxu0 %v31
  %179 = vmatprep.subr.mxu0 0.0
  %180 = vmatpush1.msra.mxu0 %v34
  %181 = vmatprep.subr.mxu0 0.0
  %182 = vmatpush1.msra.mxu0 %v37
  %183 = vmatprep.subr.mxu0 0.0
  %184 = vmatpush1.msra.mxu0 %v40
  %185 = vmatprep.subr.mxu0 0.0
  %186 = vmatpush1.msra.mxu0 %v43
  %187 = vmatprep.subr.mxu0 0.0
  %188 = vmatpush1.msra.mxu0 %v46
  %189 = vmatprep.subr.mxu0 0.0
  %190 = vmatpush1.msra.mxu0 %v49
  %191 = vmatprep.subr.mxu0 0.0
  %192 = vmatpush1.msra.mxu0 %v52
  %193 = vmatprep.subr.mxu0 0.0
  %194 = vmatpush1.msra.mxu0 %v55
  %195 = vmatprep.subr.mxu0 0.0
  %196 = vmatpush1.msra.mxu0 %v58
  %197 = vmatprep.subr.mxu0 0.0
  %198 = vmatpush1.msra.mxu0 %v61
  %199 = vmatprep.subr.mxu0 0.0
  %200 = vmatpush1.msra.mxu0 %v64
  %201 = vmatprep.subr.mxu0 0.0
  %202 = vmatpush1.msra.mxu0 %v67
  %203 = vmatprep.subr.mxu0 0.0
  %204 = vmatpush1.msra.mxu0 %v70
  %205 = vmatprep.subr.mxu0 0.0
  %206 = vmatpush1.msra.mxu0 %v73
  %207 = vmatprep.subr.mxu0 0.0
  %208 = vmatpush1.msra.mxu0 0.0
  %209 = vmatprep.subr.mxu0 0.0
  %210 = vmatpush1.msra.mxu0 0.0
  %211 = vmatprep.subr.mxu0 0.0
  %212 = vmatpush1.msra.mxu0 0.0
  %213 = vmatprep.subr.mxu0 0.0
  %214 = vmatpush1.msra.mxu0 0.0
  %215 = vmatprep.subr.mxu0 0.0
  %216 = vmatpush1.msra.mxu0 0.0
  %217 = vmatprep.subr.mxu0 0.0
  %218 = vmatpush1.msra.mxu0 0.0
  %219 = vmatprep.subr.mxu0 0.0
  %220 = vmatpush1.msra.mxu0 0.0
  %221 = vmatprep.subr.mxu0 0.0
  %222 = vmatpush1.msra.mxu0 0.0
  %223 = vmatprep.subr.mxu0 0.0
  %224 = vmatpush1.msra.mxu0 0.0
  %225 = vmatprep.subr.mxu0 0.0
  %226 = vmatpush1.msra.mxu0 0.0
  %227 = vmatprep.subr.mxu0 0.0
  %228 = vmatpush1.msra.mxu0 0.0
  %229 = vmatprep.subr.mxu0 0.0
  %230 = vmatpush1.msra.mxu0 0.0
  %231 = vmatprep.subr.mxu0 0.0
  %232 = vmatpush1.msra.mxu0 0.0
  %233 = vmatprep.subr.mxu0 0.0
  %234 = vmatpush1.msra.mxu0 0.0
  %235 = vmatprep.subr.mxu0 0.0
  %236 = vmatpush1.msra.mxu0 0.0
  %237 = vmatprep.subr.mxu0 0.0
  %238 = vmatpush1.msra.mxu0 0.0
  %239 = vmatprep.mubr.f32.mxu0 0.0
  %240 = vmatmul.mubr.f32.gmra.mrb[0].mxu0 %v23
  %v241 = vpop.f32.mrb[0].mxu0
  %v242 = vadd.f32 %v88, %v241
  %v243 = vpop.f32.mrb[0].mxu0
  %244 = vmatprep.mubr.f32.mxu0 0.0
  %245 = vmatmul.mubr.f32.gmra.mrb[0].mxu0 %v24
  %v246 = vpop.f32.mrb[0].mxu0
  %v247 = vadd.f32 %v88, %v246
  %v248 = vpop.f32.mrb[0].mxu0
  %249 = vmatprep.mubr.f32.mxu0 0.0
  %250 = vmatmul.mubr.f32.gmra.mrb[0].mxu0 %v25
  %v251 = vpop.f32.mrb[0].mxu0
  %v252 = vadd.f32 %v88, %v251
  %v253 = vpop.f32.mrb[0].mxu0
  %254 = vdwg.mxu0
  %v255 = vld [vmem:[%s0] sm:$0xff]
  %v256 = vld [vmem:[%s0 + $0x8] sm:$0xff]
  %v257 = vld [vmem:[%s0 + $0x10] sm:$0xff]
  %v258 = vld [vmem:[%s0 + $0x18] sm:$0xff]
  %v259 = vld [vmem:[%s0 + $0x20] sm:$0xff]
  %v260 = vld [vmem:[%s0 + $0x28] sm:$0xff]
  %v261 = vld [vmem:[%s0 + $0x30] sm:$0xff]
  %v262 = vld [vmem:[%s0 + $0x38] sm:$0xff]
  %v263 = vlaneseq
  %v264 = vand.u32 %v263, 127
  %265 = vset.pattern.permute.xlu0 0
  %266 = vperm.xlu0 %265, %v255
  %v267 = vpop.permute.xlu0 %266
  %268 = vset.pattern.permute.xlu0 0
  %269 = vperm.xlu0 %268, %v256
  %v270 = vpop.permute.xlu0 %269
  %271 = vset.pattern.permute.xlu0 0
  %272 = vperm.xlu0 %271, %v257
  %v273 = vpop.permute.xlu0 %272
  %274 = vset.pattern.permute.xlu0 0
  %275 = vperm.xlu0 %274, %v258
  %v276 = vpop.permute.xlu0 %275
  %277 = vset.pattern.permute.xlu0 0
  %278 = vperm.xlu0 %277, %v259
  %v279 = vpop.permute.xlu0 %278
  %280 = vset.pattern.permute.xlu0 0
  %281 = vperm.xlu0 %280, %v260
  %v282 = vpop.permute.xlu0 %281
  %283 = vset.pattern.permute.xlu0 0
  %284 = vperm.xlu0 %283, %v261
  %v285 = vpop.permute.xlu0 %284
  %286 = vset.pattern.permute.xlu0 0
  %287 = vperm.xlu0 %286, %v262
  %v288 = vpop.permute.xlu0 %287
  %vm289 = vcmp.eq.s32.totalorder %v267, %v264
  %vm290 = vcmp.eq.s32.totalorder %v270, %v264
  %vm291 = vcmp.eq.s32.totalorder %v273, %v264
  %vm292 = vcmp.eq.s32.totalorder %v276, %v264
  %vm293 = vcmp.eq.s32.totalorder %v279, %v264
  %vm294 = vcmp.eq.s32.totalorder %v282, %v264
  %vm295 = vcmp.eq.s32.totalorder %v285, %v264
  %vm296 = vcmp.eq.s32.totalorder %v288, %v264
  %v297 = vsel %vm289, 1, 0
  %v298 = vsel %vm290, 1, 0
  %v299 = vsel %vm291, 1, 0
  %v300 = vsel %vm292, 1, 0
  %v301 = vsel %vm293, 1, 0
  %v302 = vsel %vm294, 1, 0
  %v303 = vsel %vm295, 1, 0
  %v304 = vsel %vm296, 1, 0
  %v305 = vcvt.s32.f32 %v297
  %v306 = vcvt.s32.f32 %v298
  %v307 = vcvt.s32.f32 %v299
  %v308 = vcvt.s32.f32 %v300
  %v309 = vcvt.s32.f32 %v301
  %v310 = vcvt.s32.f32 %v302
  %v311 = vcvt.s32.f32 %v303
  %v312 = vcvt.s32.f32 %v304
  %vm313 = vcmask 195584
  %v315 = vsel %vm313, %v305, 0
  %v318 = vsel %vm313, %v306, 0
  %v321 = vsel %vm313, %v307, 0
  %v324 = vsel %vm313, %v308, 0
  %v327 = vsel %vm313, %v309, 0
  %v330 = vsel %vm313, %v310, 0
  %v333 = vsel %vm313, %v311, 0
  %v336 = vsel %vm313, %v312, 0
  %338 = vmatprep.subr.mxu0 %v161
  %339 = vmatpush1.msra.mxu0 %v159
  %340 = vmatprep.subr.mxu0 %v167
  %341 = vmatpush1.msra.mxu0 %v165
  %342 = vmatprep.subr.mxu0 %v173
  %343 = vmatpush1.msra.mxu0 %v171
  %344 = vmatprep.subr.mxu0 0.0
  %345 = vmatpush1.msra.mxu0 0.0
  %346 = vmatprep.subr.mxu0 0.0
  %347 = vmatpush1.msra.mxu0 0.0
  %348 = vmatprep.subr.mxu0 0.0
  %349 = vmatpush1.msra.mxu0 0.0
  %350 = vmatprep.subr.mxu0 0.0
  %351 = vmatpush1.msra.mxu0 0.0
  %352 = vmatprep.subr.mxu0 0.0
  %353 = vmatpush1.msra.mxu0 0.0
  %354 = vmatprep.subr.mxu0 0.0
  %355 = vmatpush1.msra.mxu0 0.0
  %356 = vmatprep.subr.mxu0 0.0
  %357 = vmatpush1.msra.mxu0 0.0
  %358 = vmatprep.subr.mxu0 0.0
  %359 = vmatpush1.msra.mxu0 0.0
  %360 = vmatprep.subr.mxu0 0.0
  %361 = vmatpush1.msra.mxu0 0.0
  %362 = vmatprep.subr.mxu0 0.0
  %363 = vmatpush1.msra.mxu0 0.0
  %364 = vmatprep.subr.mxu0 0.0
  %365 = vmatpush1.msra.mxu0 0.0
  %366 = vmatprep.subr.mxu0 0.0
  %367 = vmatpush1.msra.mxu0 0.0
  %368 = vmatprep.subr.mxu0 0.0
  %369 = vmatpush1.msra.mxu0 0.0
  %370 = vmatprep.subr.mxu0 0.0
  %371 = vmatpush1.msra.mxu0 0.0
  %372 = vmatprep.subr.mxu0 0.0
  %373 = vmatpush1.msra.mxu0 0.0
  %374 = vmatprep.subr.mxu0 0.0
  %375 = vmatpush1.msra.mxu0 0.0
  %376 = vmatprep.subr.mxu0 0.0
  %377 = vmatpush1.msra.mxu0 0.0
  %378 = vmatprep.subr.mxu0 0.0
  %379 = vmatpush1.msra.mxu0 0.0
  %380 = vmatprep.subr.mxu0 0.0
  %381 = vmatpush1.msra.mxu0 0.0
  %382 = vmatprep.subr.mxu0 0.0
  %383 = vmatpush1.msra.mxu0 0.0
  %384 = vmatprep.subr.mxu0 0.0
  %385 = vmatpush1.msra.mxu0 0.0
  %386 = vmatprep.subr.mxu0 0.0
  %387 = vmatpush1.msra.mxu0 0.0
  %388 = vmatprep.subr.mxu0 0.0
  %389 = vmatpush1.msra.mxu0 0.0
  %390 = vmatprep.subr.mxu0 0.0
  %391 = vmatpush1.msra.mxu0 0.0
  %392 = vmatprep.subr.mxu0 0.0
  %393 = vmatpush1.msra.mxu0 0.0
  %394 = vmatprep.subr.mxu0 0.0
  %395 = vmatpush1.msra.mxu0 0.0
  %396 = vmatprep.subr.mxu0 0.0
  %397 = vmatpush1.msra.mxu0 0.0
  %398 = vmatprep.subr.mxu0 0.0
  %399 = vmatpush1.msra.mxu0 0.0
  %400 = vmatprep.subr.mxu0 0.0
  %401 = vmatpush1.msra.mxu0 0.0
  %402 = vmatprep.mubr.f32.mxu0 0.0
  %403 = vmatmul.mubr.f32.gmra.mrb[0].mxu0 %v315
  %v404 = vpop.f32.mrb[0].mxu0
  %v405 = vadd.f32 0.0, %v404
  %v406 = vpop.f32.mrb[0].mxu0
  %v407 = vadd.f32 0.0, %v406
  %408 = vmatprep.mubr.f32.mxu0 0.0
  %409 = vmatmul.mubr.f32.gmra.mrb[0].mxu0 %v318
  %v410 = vpop.f32.mrb[0].mxu0
  %v411 = vadd.f32 0.0, %v410
  %v412 = vpop.f32.mrb[0].mxu0
  %v413 = vadd.f32 0.0, %v412
  %414 = vmatprep.mubr.f32.mxu0 0.0
  %415 = vmatmul.mubr.f32.gmra.mrb[0].mxu0 %v321
  %v416 = vpop.f32.mrb[0].mxu0
  %v417 = vadd.f32 0.0, %v416
  %v418 = vpop.f32.mrb[0].mxu0
  %v419 = vadd.f32 0.0, %v418
  %420 = vmatprep.mubr.f32.mxu0 0.0
  %421 = vmatmul.mubr.f32.gmra.mrb[0].mxu0 %v324
  %v422 = vpop.f32.mrb[0].mxu0
  %v423 = vadd.f32 0.0, %v422
  %v424 = vpop.f32.mrb[0].mxu0
  %v425 = vadd.f32 0.0, %v424
  %426 = vmatprep.mubr.f32.mxu0 0.0
  %427 = vmatmul.mubr.f32.gmra.mrb[0].mxu0 %v327
  %v428 = vpop.f32.mrb[0].mxu0
  %v429 = vadd.f32 0.0, %v428
  %v430 = vpop.f32.mrb[0].mxu0
  %v431 = vadd.f32 0.0, %v430
  %432 = vmatprep.mubr.f32.mxu0 0.0
  %433 = vmatmul.mubr.f32.gmra.mrb[0].mxu0 %v330
  %v434 = vpop.f32.mrb[0].mxu0
  %v435 = vadd.f32 0.0, %v434
  %v436 = vpop.f32.mrb[0].mxu0
  %v437 = vadd.f32 0.0, %v436
  %438 = vmatprep.mubr.f32.mxu0 0.0
  %439 = vmatmul.mubr.f32.gmra.mrb[0].mxu0 %v333
  %v440 = vpop.f32.mrb[0].mxu0
  %v441 = vadd.f32 0.0, %v440
  %v442 = vpop.f32.mrb[0].mxu0
  %v443 = vadd.f32 0.0, %v442
  %444 = vmatprep.mubr.f32.mxu0 0.0
  %445 = vmatmul.mubr.f32.gmra.mrb[0].mxu0 %v336
  %v446 = vpop.f32.mrb[0].mxu0
  %v447 = vadd.f32 0.0, %v446
  %v448 = vpop.f32.mrb[0].mxu0
  %v449 = vadd.f32 0.0, %v448
  %450 = vdwg.mxu0
  %451 = vmatprep.subr.mxu0 0.0
  %452 = vmatpush1.msra.mxu0 %v242
  %453 = vmatprep.subr.mxu0 0.0
  %454 = vmatpush1.msra.mxu0 %v247
  %455 = vmatprep.subr.mxu0 0.0
  %456 = vmatpush1.msra.mxu0 %v252
  %457 = vmatprep.subr.mxu0 0.0
  %458 = vmatpush1.msra.mxu0 0.0
  %459 = vmatprep.subr.mxu0 0.0
  %460 = vmatpush1.msra.mxu0 0.0
  %461 = vmatprep.subr.mxu0 0.0
  %462 = vmatpush1.msra.mxu0 0.0
  %463 = vmatprep.subr.mxu0 0.0
  %464 = vmatpush1.msra.mxu0 0.0
  %465 = vmatprep.subr.mxu0 0.0
  %466 = vmatpush1.msra.mxu0 0.0
  %467 = vmatprep.subr.mxu0 0.0
  %468 = vmatpush1.msra.mxu0 0.0
  %469 = vmatprep.subr.mxu0 0.0
  %470 = vmatpush1.msra.mxu0 0.0
  %471 = vmatprep.subr.mxu0 0.0
  %472 = vmatpush1.msra.mxu0 0.0
  %473 = vmatprep.subr.mxu0 0.0
  %474 = vmatpush1.msra.mxu0 0.0
  %475 = vmatprep.subr.mxu0 0.0
  %476 = vmatpush1.msra.mxu0 0.0
  %477 = vmatprep.subr.mxu0 0.0
  %478 = vmatpush1.msra.mxu0 0.0
  %479 = vmatprep.subr.mxu0 0.0
  %480 = vmatpush1.msra.mxu0 0.0
  %481 = vmatprep.subr.mxu0 0.0
  %482 = vmatpush1.msra.mxu0 0.0
  %483 = vmatprep.subr.mxu0 0.0
  %484 = vmatpush1.msra.mxu0 0.0
  %485 = vmatprep.subr.mxu0 0.0
  %486 = vmatpush1.msra.mxu0 0.0
  %487 = vmatprep.subr.mxu0 0.0
  %488 = vmatpush1.msra.mxu0 0.0
  %489 = vmatprep.subr.mxu0 0.0
  %490 = vmatpush1.msra.mxu0 0.0
  %491 = vmatprep.subr.mxu0 0.0
  %492 = vmatpush1.msra.mxu0 0.0
  %493 = vmatprep.subr.mxu0 0.0
  %494 = vmatpush1.msra.mxu0 0.0
  %495 = vmatprep.subr.mxu0 0.0
  %496 = vmatpush1.msra.mxu0 0.0
  %497 = vmatprep.subr.mxu0 0.0
  %498 = vmatpush1.msra.mxu0 0.0
  %499 = vmatprep.subr.mxu0 0.0
  %500 = vmatpush1.msra.mxu0 0.0
  %501 = vmatprep.subr.mxu0 0.0
  %502 = vmatpush1.msra.mxu0 0.0
  %503 = vmatprep.subr.mxu0 0.0
  %504 = vmatpush1.msra.mxu0 0.0
  %505 = vmatprep.subr.mxu0 0.0
  %506 = vmatpush1.msra.mxu0 0.0
  %507 = vmatprep.subr.mxu0 0.0
  %508 = vmatpush1.msra.mxu0 0.0
  %509 = vmatprep.subr.mxu0 0.0
  %510 = vmatpush1.msra.mxu0 0.0
  %511 = vmatprep.subr.mxu0 0.0
  %512 = vmatpush1.msra.mxu0 0.0
  %513 = vmatprep.subr.mxu0 0.0
  %514 = vmatpush1.msra.mxu0 0.0
  %515 = vmatprep.mubr.f32.mxu0 0.0
  %516 = vmatmul.mubr.f32.gmra.mrb[0].mxu0 %v315
  %v517 = vpop.f32.mrb[0].mxu0
  %v518 = vadd.f32 0.0, %v517
  %v519 = vpop.f32.mrb[0].mxu0
  %520 = vmatprep.mubr.f32.mxu0 0.0
  %521 = vmatmul.mubr.f32.gmra.mrb[0].mxu0 %v318
  %v522 = vpop.f32.mrb[0].mxu0
  %v523 = vadd.f32 0.0, %v522
  %v524 = vpop.f32.mrb[0].mxu0
  %525 = vmatprep.mubr.f32.mxu0 0.0
  %526 = vmatmul.mubr.f32.gmra.mrb[0].mxu0 %v321
  %v527 = vpop.f32.mrb[0].mxu0
  %v528 = vadd.f32 0.0, %v527
  %v529 = vpop.f32.mrb[0].mxu0
  %530 = vmatprep.mubr.f32.mxu0 0.0
  %531 = vmatmul.mubr.f32.gmra.mrb[0].mxu0 %v324
  %v532 = vpop.f32.mrb[0].mxu0
  %v533 = vadd.f32 0.0, %v532
  %v534 = vpop.f32.mrb[0].mxu0
  %535 = vmatprep.mubr.f32.mxu0 0.0
  %536 = vmatmul.mubr.f32.gmra.mrb[0].mxu0 %v327
  %v537 = vpop.f32.mrb[0].mxu0
  %v538 = vadd.f32 0.0, %v537
  %v539 = vpop.f32.mrb[0].mxu0
  %540 = vmatprep.mubr.f32.mxu0 0.0
  %541 = vmatmul.mubr.f32.gmra.mrb[0].mxu0 %v330
  %v542 = vpop.f32.mrb[0].mxu0
  %v543 = vadd.f32 0.0, %v542
  %v544 = vpop.f32.mrb[0].mxu0
  %545 = vmatprep.mubr.f32.mxu0 0.0
  %546 = vmatmul.mubr.f32.gmra.mrb[0].mxu0 %v333
  %v547 = vpop.f32.mrb[0].mxu0
  %v548 = vadd.f32 0.0, %v547
  %v549 = vpop.f32.mrb[0].mxu0
  %550 = vmatprep.mubr.f32.mxu0 0.0
  %551 = vmatmul.mubr.f32.gmra.mrb[0].mxu0 %v336
  %v552 = vpop.f32.mrb[0].mxu0
  %v553 = vadd.f32 0.0, %v552
  %v554 = vpop.f32.mrb[0].mxu0
  %555 = vdwg.mxu0
  %556 = vst [vmem:[#allocation2] sm:$0xff] %v405
  %557 = vst [vmem:[#allocation2 + $0x8] sm:$0xff] %v407
  %558 = vst [vmem:[#allocation2 + $0x10] sm:$0xff] %v518
  %559 = vst [vmem:[#allocation2 + $0x18] sm:$0xff] %v411
  %560 = vst [vmem:[#allocation2 + $0x20] sm:$0xff] %v413
  %561 = vst [vmem:[#allocation2 + $0x28] sm:$0xff] %v523
  %562 = vst [vmem:[#allocation2 + $0x30] sm:$0xff] %v417
  %563 = vst [vmem:[#allocation2 + $0x38] sm:$0xff] %v419
  %564 = vst [vmem:[#allocation2 + $0x40] sm:$0xff] %v528
  %565 = vst [vmem:[#allocation2 + $0x48] sm:$0xff] %v423
  %566 = vst [vmem:[#allocation2 + $0x50] sm:$0xff] %v425
  %567 = vst [vmem:[#allocation2 + $0x58] sm:$0xff] %v533
  %568 = vst [vmem:[#allocation2 + $0x60] sm:$0xff] %v429
  %569 = vst [vmem:[#allocation2 + $0x68] sm:$0xff] %v431
  %570 = vst [vmem:[#allocation2 + $0x70] sm:$0xff] %v538
  %571 = vst [vmem:[#allocation2 + $0x78] sm:$0xff] %v435
  %572 = vst [vmem:[#allocation2 + $0x80] sm:$0xff] %v437
  %573 = vst [vmem:[#allocation2 + $0x88] sm:$0xff] %v543
  %574 = vst [vmem:[#allocation2 + $0x90] sm:$0xff] %v441
  %575 = vst [vmem:[#allocation2 + $0x98] sm:$0xff] %v443
  %576 = vst [vmem:[#allocation2 + $0xa0] sm:$0xff] %v548
  %577 = vst [vmem:[#allocation2 + $0xa8] sm:$0xff] %v447
  %578 = vst [vmem:[#allocation2 + $0xb0] sm:$0xff] %v449
  %579 = vst [vmem:[#allocation2 + $0xb8] sm:$0xff] %v553
  %v580 = vld [vmem:[%s4 + $0x180] sm:$0xff]
  %v581 = vld [vmem:[%s4 + $0x188] sm:$0xff]
  %v582 = vld [vmem:[%s4 + $0x190] sm:$0xff]
  %v583 = vld [vmem:[%s4 + $0x198] sm:$0xff]
  %v584 = vld [vmem:[%s4 + $0x1a0] sm:$0xff]
  %v585 = vld [vmem:[%s4 + $0x1a8] sm:$0xff]
  %v586 = vld [vmem:[%s4 + $0x1b0] sm:$0xff]
  %v587 = vld [vmem:[%s4 + $0x1b8] sm:$0xff]
  %v588 = vld [vmem:[%s4 + $0x1c0] sm:$0xff]
  %v589 = vld [vmem:[%s4 + $0x1c8] sm:$0xff]
  %v590 = vld [vmem:[%s4 + $0x1d0] sm:$0xff]
  %v591 = vld [vmem:[%s4 + $0x1d8] sm:$0xff]
  %s592 = scalar_lea.vmem %s4, 504
  %v593 = vld [vmem:[%s592] ss:$8 sm:$0x7]
  %v595 = vlaneseq
  %v596 = vshrl.u32 %v595, 7
  %v597 = vsub.s32 0, %v596
  %v598 = vrot.slane %v593, %v597
  %v599 = vlaneseq
  %v600 = vshrl.u32 %v599, 7
  %v601 = vsub.s32 1, %v600
  %v602 = vrot.slane %v593, %v601
  %v603 = vlaneseq
  %v604 = vshrl.u32 %v603, 7
  %v605 = vsub.s32 2, %v604
  %v606 = vrot.slane %v593, %v605
  %v610 = vld [vmem:[%s1] sm:$0xff]
  %611 = vset.pattern.permute.xlu0 0
  %612 = vperm.xlu0 %611, %v610
  %v613 = vpop.permute.xlu0 %612
  %v614 = vld [vmem:[#allocation2] sm:$0xff]
  %v615 = vld [vmem:[#allocation2 + $0x8] sm:$0xff]
  %v616 = vld [vmem:[#allocation2 + $0x10] sm:$0xff]
  %vm617 = vcmask 261120
  %v619 = vsel %vm617, 0.0, 0
  %621 = vmatprep.subr.mxu0 %v581
  %622 = vmatpush1.msra.mxu0 %v580
  %623 = vmatprep.subr.mxu0 %v584
  %624 = vmatpush1.msra.mxu0 %v583
  %625 = vmatprep.subr.mxu0 %v587
  %626 = vmatpush1.msra.mxu0 %v586
  %627 = vmatprep.subr.mxu0 %v590
  %628 = vmatpush1.msra.mxu0 %v589
  %629 = vmatprep.subr.mxu0 0.0
  %630 = vmatpush1.msra.mxu0 0.0
  %631 = vmatprep.subr.mxu0 0.0
  %632 = vmatpush1.msra.mxu0 0.0
  %633 = vmatprep.subr.mxu0 0.0
  %634 = vmatpush1.msra.mxu0 0.0
  %635 = vmatprep.subr.mxu0 0.0
  %636 = vmatpush1.msra.mxu0 0.0
  %637 = vmatprep.subr.mxu0 0.0
  %638 = vmatpush1.msra.mxu0 0.0
  %639 = vmatprep.subr.mxu0 0.0
  %640 = vmatpush1.msra.mxu0 0.0
  %641 = vmatprep.subr.mxu0 0.0
  %642 = vmatpush1.msra.mxu0 0.0
  %643 = vmatprep.subr.mxu0 0.0
  %644 = vmatpush1.msra.mxu0 0.0
  %645 = vmatprep.subr.mxu0 0.0
  %646 = vmatpush1.msra.mxu0 0.0
  %647 = vmatprep.subr.mxu0 0.0
  %648 = vmatpush1.msra.mxu0 0.0
  %649 = vmatprep.subr.mxu0 0.0
  %650 = vmatpush1.msra.mxu0 0.0
  %651 = vmatprep.subr.mxu0 0.0
  %652 = vmatpush1.msra.mxu0 0.0
  %653 = vmatprep.subr.mxu0 0.0
  %654 = vmatpush1.msra.mxu0 0.0
  %655 = vmatprep.subr.mxu0 0.0
  %656 = vmatpush1.msra.mxu0 0.0
  %657 = vmatprep.subr.mxu0 0.0
  %658 = vmatpush1.msra.mxu0 0.0
  %659 = vmatprep.subr.mxu0 0.0
  %660 = vmatpush1.msra.mxu0 0.0
  %661 = vmatprep.subr.mxu0 0.0
  %662 = vmatpush1.msra.mxu0 0.0
  %663 = vmatprep.subr.mxu0 0.0
  %664 = vmatpush1.msra.mxu0 0.0
  %665 = vmatprep.subr.mxu0 0.0
  %666 = vmatpush1.msra.mxu0 0.0
  %667 = vmatprep.subr.mxu0 0.0
  %668 = vmatpush1.msra.mxu0 0.0
  %669 = vmatprep.subr.mxu0 0.0
  %670 = vmatpush1.msra.mxu0 0.0
  %671 = vmatprep.subr.mxu0 0.0
  %672 = vmatpush1.msra.mxu0 0.0
  %673 = vmatprep.subr.mxu0 0.0
  %674 = vmatpush1.msra.mxu0 0.0
  %675 = vmatprep.subr.mxu0 0.0
  %676 = vmatpush1.msra.mxu0 0.0
  %677 = vmatprep.subr.mxu0 0.0
  %678 = vmatpush1.msra.mxu0 0.0
  %679 = vmatprep.subr.mxu0 0.0
  %680 = vmatpush1.msra.mxu0 0.0
  %681 = vmatprep.subr.mxu0 0.0
  %682 = vmatpush1.msra.mxu0 0.0
  %683 = vmatprep.subr.mxu0 0.0
  %684 = vmatpush1.msra.mxu0 0.0
  %685 = vmatprep.mubr.f32.mxu0 0.0
  %686 = vmatmul.mubr.f32.gmra.mrb[0].mxu0 %v619
  %v687 = vpop.f32.mrb[0].mxu0
  %v688 = vadd.f32 %v598, %v687
  %v689 = vpop.f32.mrb[0].mxu0
  %v690 = vadd.f32 %v602, %v689
  %691 = vdwg.mxu0
  %692 = vmatprep.subr.mxu0 0.0
  %693 = vmatpush1.msra.mxu0 %v582
  %694 = vmatprep.subr.mxu0 0.0
  %695 = vmatpush1.msra.mxu0 %v585
  %696 = vmatprep.subr.mxu0 0.0
  %697 = vmatpush1.msra.mxu0 %v588
  %698 = vmatprep.subr.mxu0 0.0
  %699 = vmatpush1.msra.mxu0 %v591
  %700 = vmatprep.subr.mxu0 0.0
  %701 = vmatpush1.msra.mxu0 0.0
  %702 = vmatprep.subr.mxu0 0.0
  %703 = vmatpush1.msra.mxu0 0.0
  %704 = vmatprep.subr.mxu0 0.0
  %705 = vmatpush1.msra.mxu0 0.0
  %706 = vmatprep.subr.mxu0 0.0
  %707 = vmatpush1.msra.mxu0 0.0
  %708 = vmatprep.subr.mxu0 0.0
  %709 = vmatpush1.msra.mxu0 0.0
  %710 = vmatprep.subr.mxu0 0.0
  %711 = vmatpush1.msra.mxu0 0.0
  %712 = vmatprep.subr.mxu0 0.0
  %713 = vmatpush1.msra.mxu0 0.0
  %714 = vmatprep.subr.mxu0 0.0
  %715 = vmatpush1.msra.mxu0 0.0
  %716 = vmatprep.subr.mxu0 0.0
  %717 = vmatpush1.msra.mxu0 0.0
  %718 = vmatprep.subr.mxu0 0.0
  %719 = vmatpush1.msra.mxu0 0.0
  %720 = vmatprep.subr.mxu0 0.0
  %721 = vmatpush1.msra.mxu0 0.0
  %722 = vmatprep.subr.mxu0 0.0
  %723 = vmatpush1.msra.mxu0 0.0
  %724 = vmatprep.subr.mxu0 0.0
  %725 = vmatpush1.msra.mxu0 0.0
  %726 = vmatprep.subr.mxu0 0.0
  %727 = vmatpush1.msra.mxu0 0.0
  %728 = vmatprep.subr.mxu0 0.0
  %729 = vmatpush1.msra.mxu0 0.0
  %730 = vmatprep.subr.mxu0 0.0
  %731 = vmatpush1.msra.mxu0 0.0
  %732 = vmatprep.subr.mxu0 0.0
  %733 = vmatpush1.msra.mxu0 0.0
  %734 = vmatprep.subr.mxu0 0.0
  %735 = vmatpush1.msra.mxu0 0.0
  %736 = vmatprep.subr.mxu0 0.0
  %737 = vmatpush1.msra.mxu0 0.0
  %738 = vmatprep.subr.mxu0 0.0
  %739 = vmatpush1.msra.mxu0 0.0
  %740 = vmatprep.subr.mxu0 0.0
  %741 = vmatpush1.msra.mxu0 0.0
  %742 = vmatprep.subr.mxu0 0.0
  %743 = vmatpush1.msra.mxu0 0.0
  %744 = vmatprep.subr.mxu0 0.0
  %745 = vmatpush1.msra.mxu0 0.0
  %746 = vmatprep.subr.mxu0 0.0
  %747 = vmatpush1.msra.mxu0 0.0
  %748 = vmatprep.subr.mxu0 0.0
  %749 = vmatpush1.msra.mxu0 0.0
  %750 = vmatprep.subr.mxu0 0.0
  %751 = vmatpush1.msra.mxu0 0.0
  %752 = vmatprep.subr.mxu0 0.0
  %753 = vmatpush1.msra.mxu0 0.0
  %754 = vmatprep.subr.mxu0 0.0
  %755 = vmatpush1.msra.mxu0 0.0
  %756 = vmatprep.mubr.f32.mxu0 0.0
  %757 = vmatmul.mubr.f32.gmra.mrb[0].mxu0 %v619
  %v758 = vpop.f32.mrb[0].mxu0
  %v759 = vadd.f32 %v606, %v758
  %v760 = vpop.f32.mrb[0].mxu0
  %761 = vdwg.mxu0
  %v762 = vadd.f32 %v614, %v688
  %v763 = vadd.f32 %v615, %v690
  %v764 = vxor.u32 %v762, 2147483648
  %v765 = vxor.u32 %v763, 2147483648
  %v766 = vmul.f32 %v764, 1.442695
  %v767 = vpow.pop %v766
  %v768 = vmul.f32 %v765, 1.442695
  %v769 = vpow.pop %v768
  %v770 = vadd.f32 %v767, 1.0
  %v771 = vadd.f32 %v769, 1.0
  %v772 = vrcp.pop %v770
  %v773 = vmul.f32 1.0, %v772
  %v774 = vrcp.pop %v771
  %v775 = vmul.f32 1.0, %v774
  %v776 = vmul.f32 %v773, %v759
  %v777 = vadd.f32 %v616, %v776
  %v778 = vtanh.pop %v777
  %v779 = vsub.f32 1.0, %v775
  %v780 = vmul.f32 %v779, %v778
  %v781 = vmul.f32 %v775, 0.0
  %v782 = vadd.f32 %v780, %v781
  %vm783 = vcmp.gt.s32.totalorder %v613, 0
  %v784 = vsel %vm783, %v782, 0.0
  %v785 = vld [vmem:[#allocation2 + $0x18] sm:$0xff]
  %v786 = vld [vmem:[#allocation2 + $0x20] sm:$0xff]
  %v787 = vld [vmem:[#allocation2 + $0x28] sm:$0xff]
  %v789 = vsel %vm617, %v784, 0
  %791 = vmatprep.subr.mxu0 %v581
  %792 = vmatpush1.msra.mxu0 %v580
  %793 = vmatprep.subr.mxu0 %v584
  %794 = vmatpush1.msra.mxu0 %v583
  %795 = vmatprep.subr.mxu0 %v587
  %796 = vmatpush1.msra.mxu0 %v586
  %797 = vmatprep.subr.mxu0 %v590
  %798 = vmatpush1.msra.mxu0 %v589
  %799 = vmatprep.subr.mxu0 0.0
  %800 = vmatpush1.msra.mxu0 0.0
  %801 = vmatprep.subr.mxu0 0.0
  %802 = vmatpush1.msra.mxu0 0.0
  %803 = vmatprep.subr.mxu0 0.0
  %804 = vmatpush1.msra.mxu0 0.0
  %805 = vmatprep.subr.mxu0 0.0
  %806 = vmatpush1.msra.mxu0 0.0
  %807 = vmatprep.subr.mxu0 0.0
  %808 = vmatpush1.msra.mxu0 0.0
  %809 = vmatprep.subr.mxu0 0.0
  %810 = vmatpush1.msra.mxu0 0.0
  %811 = vmatprep.subr.mxu0 0.0
  %812 = vmatpush1.msra.mxu0 0.0
  %813 = vmatprep.subr.mxu0 0.0
  %814 = vmatpush1.msra.mxu0 0.0
  %815 = vmatprep.subr.mxu0 0.0
  %816 = vmatpush1.msra.mxu0 0.0
  %817 = vmatprep.subr.mxu0 0.0
  %818 = vmatpush1.msra.mxu0 0.0
  %819 = vmatprep.subr.mxu0 0.0
  %820 = vmatpush1.msra.mxu0 0.0
  %821 = vmatprep.subr.mxu0 0.0
  %822 = vmatpush1.msra.mxu0 0.0
  %823 = vmatprep.subr.mxu0 0.0
  %824 = vmatpush1.msra.mxu0 0.0
  %825 = vmatprep.subr.mxu0 0.0
  %826 = vmatpush1.msra.mxu0 0.0
  %827 = vmatprep.subr.mxu0 0.0
  %828 = vmatpush1.msra.mxu0 0.0
  %829 = vmatprep.subr.mxu0 0.0
  %830 = vmatpush1.msra.mxu0 0.0
  %831 = vmatprep.subr.mxu0 0.0
  %832 = vmatpush1.msra.mxu0 0.0
  %833 = vmatprep.subr.mxu0 0.0
  %834 = vmatpush1.msra.mxu0 0.0
  %835 = vmatprep.subr.mxu0 0.0
  %836 = vmatpush1.msra.mxu0 0.0
  %837 = vmatprep.subr.mxu0 0.0
  %838 = vmatpush1.msra.mxu0 0.0
  %839 = vmatprep.subr.mxu0 0.0
  %840 = vmatpush1.msra.mxu0 0.0
  %841 = vmatprep.subr.mxu0 0.0
  %842 = vmatpush1.msra.mxu0 0.0
  %843 = vmatprep.subr.mxu0 0.0
  %844 = vmatpush1.msra.mxu0 0.0
  %845 = vmatprep.subr.mxu0 0.0
  %846 = vmatpush1.msra.mxu0 0.0
  %847 = vmatprep.subr.mxu0 0.0
  %848 = vmatpush1.msra.mxu0 0.0
  %849 = vmatprep.subr.mxu0 0.0
  %850 = vmatpush1.msra.mxu0 0.0
  %851 = vmatprep.subr.mxu0 0.0
  %852 = vmatpush1.msra.mxu0 0.0
  %853 = vmatprep.subr.mxu0 0.0
  %854 = vmatpush1.msra.mxu0 0.0
  %855 = vmatprep.mubr.f32.mxu0 0.0
  %856 = vmatmul.mubr.f32.gmra.mrb[0].mxu0 %v789
  %v857 = vpop.f32.mrb[0].mxu0
  %v858 = vadd.f32 %v598, %v857
  %v859 = vpop.f32.mrb[0].mxu0
  %v860 = vadd.f32 %v602, %v859
  %861 = vdwg.mxu0
  %862 = vmatprep.subr.mxu0 0.0
  %863 = vmatpush1.msra.mxu0 %v582
  %864 = vmatprep.subr.mxu0 0.0
  %865 = vmatpush1.msra.mxu0 %v585
  %866 = vmatprep.subr.mxu0 0.0
  %867 = vmatpush1.msra.mxu0 %v588
  %868 = vmatprep.subr.mxu0 0.0
  %869 = vmatpush1.msra.mxu0 %v591
  %870 = vmatprep.subr.mxu0 0.0
  %871 = vmatpush1.msra.mxu0 0.0
  %872 = vmatprep.subr.mxu0 0.0
  %873 = vmatpush1.msra.mxu0 0.0
  %874 = vmatprep.subr.mxu0 0.0
  %875 = vmatpush1.msra.mxu0 0.0
  %876 = vmatprep.subr.mxu0 0.0
  %877 = vmatpush1.msra.mxu0 0.0
  %878 = vmatprep.subr.mxu0 0.0
  %879 = vmatpush1.msra.mxu0 0.0
  %880 = vmatprep.subr.mxu0 0.0
  %881 = vmatpush1.msra.mxu0 0.0
  %882 = vmatprep.subr.mxu0 0.0
  %883 = vmatpush1.msra.mxu0 0.0
  %884 = vmatprep.subr.mxu0 0.0
  %885 = vmatpush1.msra.mxu0 0.0
  %886 = vmatprep.subr.mxu0 0.0
  %887 = vmatpush1.msra.mxu0 0.0
  %888 = vmatprep.subr.mxu0 0.0
  %889 = vmatpush1.msra.mxu0 0.0
  %890 = vmatprep.subr.mxu0 0.0
  %891 = vmatpush1.msra.mxu0 0.0
  %892 = vmatprep.subr.mxu0 0.0
  %893 = vmatpush1.msra.mxu0 0.0
  %894 = vmatprep.subr.mxu0 0.0
  %895 = vmatpush1.msra.mxu0 0.0
  %896 = vmatprep.subr.mxu0 0.0
  %897 = vmatpush1.msra.mxu0 0.0
  %898 = vmatprep.subr.mxu0 0.0
  %899 = vmatpush1.msra.mxu0 0.0
  %900 = vmatprep.subr.mxu0 0.0
  %901 = vmatpush1.msra.mxu0 0.0
  %902 = vmatprep.subr.mxu0 0.0
  %903 = vmatpush1.msra.mxu0 0.0
  %904 = vmatprep.subr.mxu0 0.0
  %905 = vmatpush1.msra.mxu0 0.0
  %906 = vmatprep.subr.mxu0 0.0
  %907 = vmatpush1.msra.mxu0 0.0
  %908 = vmatprep.subr.mxu0 0.0
  %909 = vmatpush1.msra.mxu0 0.0
  %910 = vmatprep.subr.mxu0 0.0
  %911 = vmatpush1.msra.mxu0 0.0
  %912 = vmatprep.subr.mxu0 0.0
  %913 = vmatpush1.msra.mxu0 0.0
  %914 = vmatprep.subr.mxu0 0.0
  %915 = vmatpush1.msra.mxu0 0.0
  %916 = vmatprep.subr.mxu0 0.0
  %917 = vmatpush1.msra.mxu0 0.0
  %918 = vmatprep.subr.mxu0 0.0
  %919 = vmatpush1.msra.mxu0 0.0
  %920 = vmatprep.subr.mxu0 0.0
  %921 = vmatpush1.msra.mxu0 0.0
  %922 = vmatprep.subr.mxu0 0.0
  %923 = vmatpush1.msra.mxu0 0.0
  %924 = vmatprep.subr.mxu0 0.0
  %925 = vmatpush1.msra.mxu0 0.0
  %926 = vmatprep.mubr.f32.mxu0 0.0
  %927 = vmatmul.mubr.f32.gmra.mrb[0].mxu0 %v789
  %v928 = vpop.f32.mrb[0].mxu0
  %v929 = vadd.f32 %v606, %v928
  %v930 = vpop.f32.mrb[0].mxu0
  %931 = vdwg.mxu0
  %v932 = vadd.f32 %v785, %v858
  %v933 = vadd.f32 %v786, %v860
  %v934 = vxor.u32 %v932, 2147483648
  %v935 = vxor.u32 %v933, 2147483648
  %v936 = vmul.f32 %v934, 1.442695
  %v937 = vpow.pop %v936
  %v938 = vmul.f32 %v935, 1.442695
  %v939 = vpow.pop %v938
  %v940 = vadd.f32 %v937, 1.0
  %v941 = vadd.f32 %v939, 1.0
  %v942 = vrcp.pop %v940
  %v943 = vmul.f32 1.0, %v942
  %v944 = vrcp.pop %v941
  %v945 = vmul.f32 1.0, %v944
  %v946 = vmul.f32 %v943, %v929
  %v947 = vadd.f32 %v787, %v946
  %v948 = vtanh.pop %v947
  %v949 = vsub.f32 1.0, %v945
  %v950 = vmul.f32 %v949, %v948
  %v951 = vmul.f32 %v945, %v784
  %v952 = vadd.f32 %v950, %v951
  %vm953 = vcmp.gt.s32.totalorder %v613, 1
  %v954 = vsel %vm953, %v952, %v784
  %v955 = vld [vmem:[#allocation2 + $0x30] sm:$0xff]
  %v956 = vld [vmem:[#allocation2 + $0x38] sm:$0xff]
  %v957 = vld [vmem:[#allocation2 + $0x40] sm:$0xff]
  %v959 = vsel %vm617, %v954, 0
  %961 = vmatprep.subr.mxu0 %v581
  %962 = vmatpush1.msra.mxu0 %v580
  %963 = vmatprep.subr.mxu0 %v584
  %964 = vmatpush1.msra.mxu0 %v583
  %965 = vmatprep.subr.mxu0 %v587
  %966 = vmatpush1.msra.mxu0 %v586
  %967 = vmatprep.subr.mxu0 %v590
  %968 = vmatpush1.msra.mxu0 %v589
  %969 = vmatprep.subr.mxu0 0.0
  %970 = vmatpush1.msra.mxu0 0.0
  %971 = vmatprep.subr.mxu0 0.0
  %972 = vmatpush1.msra.mxu0 0.0
  %973 = vmatprep.subr.mxu0 0.0
  %974 = vmatpush1.msra.mxu0 0.0
  %975 = vmatprep.subr.mxu0 0.0
  %976 = vmatpush1.msra.mxu0 0.0
  %977 = vmatprep.subr.mxu0 0.0
  %978 = vmatpush1.msra.mxu0 0.0
  %979 = vmatprep.subr.mxu0 0.0
  %980 = vmatpush1.msra.mxu0 0.0
  %981 = vmatprep.subr.mxu0 0.0
  %982 = vmatpush1.msra.mxu0 0.0
  %983 = vmatprep.subr.mxu0 0.0
  %984 = vmatpush1.msra.mxu0 0.0
  %985 = vmatprep.subr.mxu0 0.0
  %986 = vmatpush1.msra.mxu0 0.0
  %987 = vmatprep.subr.mxu0 0.0
  %988 = vmatpush1.msra.mxu0 0.0
  %989 = vmatprep.subr.mxu0 0.0
  %990 = vmatpush1.msra.mxu0 0.0
  %991 = vmatprep.subr.mxu0 0.0
  %992 = vmatpush1.msra.mxu0 0.0
  %993 = vmatprep.subr.mxu0 0.0
  %994 = vmatpush1.msra.mxu0 0.0
  %995 = vmatprep.subr.mxu0 0.0
  %996 = vmatpush1.msra.mxu0 0.0
  %997 = vmatprep.subr.mxu0 0.0
  %998 = vmatpush1.msra.mxu0 0.0
  %999 = vmatprep.subr.mxu0 0.0
  %1000 = vmatpush1.msra.mxu0 0.0
  %1001 = vmatprep.subr.mxu0 0.0
  %1002 = vmatpush1.msra.mxu0 0.0
  %1003 = vmatprep.subr.mxu0 0.0
  %1004 = vmatpush1.msra.mxu0 0.0
  %1005 = vmatprep.subr.mxu0 0.0
  %1006 = vmatpush1.msra.mxu0 0.0
  %1007 = vmatprep.subr.mxu0 0.0
  %1008 = vmatpush1.msra.mxu0 0.0
  %1009 = vmatprep.subr.mxu0 0.0
  %1010 = vmatpush1.msra.mxu0 0.0
  %1011 = vmatprep.subr.mxu0 0.0
  %1012 = vmatpush1.msra.mxu0 0.0
  %1013 = vmatprep.subr.mxu0 0.0
  %1014 = vmatpush1.msra.mxu0 0.0
  %1015 = vmatprep.subr.mxu0 0.0
  %1016 = vmatpush1.msra.mxu0 0.0
  %1017 = vmatprep.subr.mxu0 0.0
  %1018 = vmatpush1.msra.mxu0 0.0
  %1019 = vmatprep.subr.mxu0 0.0
  %1020 = vmatpush1.msra.mxu0 0.0
  %1021 = vmatprep.subr.mxu0 0.0
  %1022 = vmatpush1.msra.mxu0 0.0
  %1023 = vmatprep.subr.mxu0 0.0
  %1024 = vmatpush1.msra.mxu0 0.0
  %1025 = vmatprep.mubr.f32.mxu0 0.0
  %1026 = vmatmul.mubr.f32.gmra.mrb[0].mxu0 %v959
  %v1027 = vpop.f32.mrb[0].mxu0
  %v1028 = vadd.f32 %v598, %v1027
  %v1029 = vpop.f32.mrb[0].mxu0
  %v1030 = vadd.f32 %v602, %v1029
  %1031 = vdwg.mxu0
  %1032 = vmatprep.subr.mxu0 0.0
  %1033 = vmatpush1.msra.mxu0 %v582
  %1034 = vmatprep.subr.mxu0 0.0
  %1035 = vmatpush1.msra.mxu0 %v585
  %1036 = vmatprep.subr.mxu0 0.0
  %1037 = vmatpush1.msra.mxu0 %v588
  %1038 = vmatprep.subr.mxu0 0.0
  %1039 = vmatpush1.msra.mxu0 %v591
  %1040 = vmatprep.subr.mxu0 0.0
  %1041 = vmatpush1.msra.mxu0 0.0
  %1042 = vmatprep.subr.mxu0 0.0
  %1043 = vmatpush1.msra.mxu0 0.0
  %1044 = vmatprep.subr.mxu0 0.0
  %1045 = vmatpush1.msra.mxu0 0.0
  %1046 = vmatprep.subr.mxu0 0.0
  %1047 = vmatpush1.msra.mxu0 0.0
  %1048 = vmatprep.subr.mxu0 0.0
  %1049 = vmatpush1.msra.mxu0 0.0
  %1050 = vmatprep.subr.mxu0 0.0
  %1051 = vmatpush1.msra.mxu0 0.0
  %1052 = vmatprep.subr.mxu0 0.0
  %1053 = vmatpush1.msra.mxu0 0.0
  %1054 = vmatprep.subr.mxu0 0.0
  %1055 = vmatpush1.msra.mxu0 0.0
  %1056 = vmatprep.subr.mxu0 0.0
  %1057 = vmatpush1.msra.mxu0 0.0
  %1058 = vmatprep.subr.mxu0 0.0
  %1059 = vmatpush1.msra.mxu0 0.0
  %1060 = vmatprep.subr.mxu0 0.0
  %1061 = vmatpush1.msra.mxu0 0.0
  %1062 = vmatprep.subr.mxu0 0.0
  %1063 = vmatpush1.msra.mxu0 0.0
  %1064 = vmatprep.subr.mxu0 0.0
  %1065 = vmatpush1.msra.mxu0 0.0
  %1066 = vmatprep.subr.mxu0 0.0
  %1067 = vmatpush1.msra.mxu0 0.0
  %1068 = vmatprep.subr.mxu0 0.0
  %1069 = vmatpush1.msra.mxu0 0.0
  %1070 = vmatprep.subr.mxu0 0.0
  %1071 = vmatpush1.msra.mxu0 0.0
  %1072 = vmatprep.subr.mxu0 0.0
  %1073 = vmatpush1.msra.mxu0 0.0
  %1074 = vmatprep.subr.mxu0 0.0
  %1075 = vmatpush1.msra.mxu0 0.0
  %1076 = vmatprep.subr.mxu0 0.0
  %1077 = vmatpush1.msra.mxu0 0.0
  %1078 = vmatprep.subr.mxu0 0.0
  %1079 = vmatpush1.msra.mxu0 0.0
  %1080 = vmatprep.subr.mxu0 0.0
  %1081 = vmatpush1.msra.mxu0 0.0
  %1082 = vmatprep.subr.mxu0 0.0
  %1083 = vmatpush1.msra.mxu0 0.0
  %1084 = vmatprep.subr.mxu0 0.0
  %1085 = vmatpush1.msra.mxu0 0.0
  %1086 = vmatprep.subr.mxu0 0.0
  %1087 = vmatpush1.msra.mxu0 0.0
  %1088 = vmatprep.subr.mxu0 0.0
  %1089 = vmatpush1.msra.mxu0 0.0
  %1090 = vmatprep.subr.mxu0 0.0
  %1091 = vmatpush1.msra.mxu0 0.0
  %1092 = vmatprep.subr.mxu0 0.0
  %1093 = vmatpush1.msra.mxu0 0.0
  %1094 = vmatprep.subr.mxu0 0.0
  %1095 = vmatpush1.msra.mxu0 0.0
  %1096 = vmatprep.mubr.f32.mxu0 0.0
  %1097 = vmatmul.mubr.f32.gmra.mrb[0].mxu0 %v959
  %v1098 = vpop.f32.mrb[0].mxu0
  %v1099 = vadd.f32 %v606, %v1098
  %v1100 = vpop.f32.mrb[0].mxu0
  %1101 = vdwg.mxu0
  %v1102 = vadd.f32 %v955, %v1028
  %v1103 = vadd.f32 %v956, %v1030
  %v1104 = vxor.u32 %v1102, 2147483648
  %v1105 = vxor.u32 %v1103, 2147483648
  %v1106 = vmul.f32 %v1104, 1.442695
  %v1107 = vpow.pop %v1106
  %v1108 = vmul.f32 %v1105, 1.442695
  %v1109 = vpow.pop %v1108
  %v1110 = vadd.f32 %v1107, 1.0
  %v1111 = vadd.f32 %v1109, 1.0
  %v1112 = vrcp.pop %v1110
  %v1113 = vmul.f32 1.0, %v1112
  %v1114 = vrcp.pop %v1111
  %v1115 = vmul.f32 1.0, %v1114
  %v1116 = vmul.f32 %v1113, %v1099
  %v1117 = vadd.f32 %v957, %v1116
  %v1118 = vtanh.pop %v1117
  %v1119 = vsub.f32 1.0, %v1115
  %v1120 = vmul.f32 %v1119, %v1118
  %v1121 = vmul.f32 %v1115, %v954
  %v1122 = vadd.f32 %v1120, %v1121
  %vm1123 = vcmp.gt.s32.totalorder %v613, 2
  %v1124 = vsel %vm1123, %v1122, %v954
  %v1125 = vld [vmem:[#allocation2 + $0x48] sm:$0xff]
  %v1126 = vld [vmem:[#allocation2 + $0x50] sm:$0xff]
  %v1127 = vld [vmem:[#allocation2 + $0x58] sm:$0xff]
  %v1129 = vsel %vm617, %v1124, 0
  %1131 = vmatprep.subr.mxu0 %v581
  %1132 = vmatpush1.msra.mxu0 %v580
  %1133 = vmatprep.subr.mxu0 %v584
  %1134 = vmatpush1.msra.mxu0 %v583
  %1135 = vmatprep.subr.mxu0 %v587
  %1136 = vmatpush1.msra.mxu0 %v586
  %1137 = vmatprep.subr.mxu0 %v590
  %1138 = vmatpush1.msra.mxu0 %v589
  %1139 = vmatprep.subr.mxu0 0.0
  %1140 = vmatpush1.msra.mxu0 0.0
  %1141 = vmatprep.subr.mxu0 0.0
  %1142 = vmatpush1.msra.mxu0 0.0
  %1143 = vmatprep.subr.mxu0 0.0
  %1144 = vmatpush1.msra.mxu0 0.0
  %1145 = vmatprep.subr.mxu0 0.0
  %1146 = vmatpush1.msra.mxu0 0.0
  %1147 = vmatprep.subr.mxu0 0.0
  %1148 = vmatpush1.msra.mxu0 0.0
  %1149 = vmatprep.subr.mxu0 0.0
  %1150 = vmatpush1.msra.mxu0 0.0
  %1151 = vmatprep.subr.mxu0 0.0
  %1152 = vmatpush1.msra.mxu0 0.0
  %1153 = vmatprep.subr.mxu0 0.0
  %1154 = vmatpush1.msra.mxu0 0.0
  %1155 = vmatprep.subr.mxu0 0.0
  %1156 = vmatpush1.msra.mxu0 0.0
  %1157 = vmatprep.subr.mxu0 0.0
  %1158 = vmatpush1.msra.mxu0 0.0
  %1159 = vmatprep.subr.mxu0 0.0
  %1160 = vmatpush1.msra.mxu0 0.0
  %1161 = vmatprep.subr.mxu0 0.0
  %1162 = vmatpush1.msra.mxu0 0.0
  %1163 = vmatprep.subr.mxu0 0.0
  %1164 = vmatpush1.msra.mxu0 0.0
  %1165 = vmatprep.subr.mxu0 0.0
  %1166 = vmatpush1.msra.mxu0 0.0
  %1167 = vmatprep.subr.mxu0 0.0
  %1168 = vmatpush1.msra.mxu0 0.0
  %1169 = vmatprep.subr.mxu0 0.0
  %1170 = vmatpush1.msra.mxu0 0.0
  %1171 = vmatprep.subr.mxu0 0.0
  %1172 = vmatpush1.msra.mxu0 0.0
  %1173 = vmatprep.subr.mxu0 0.0
  %1174 = vmatpush1.msra.mxu0 0.0
  %1175 = vmatprep.subr.mxu0 0.0
  %1176 = vmatpush1.msra.mxu0 0.0
  %1177 = vmatprep.subr.mxu0 0.0
  %1178 = vmatpush1.msra.mxu0 0.0
  %1179 = vmatprep.subr.mxu0 0.0
  %1180 = vmatpush1.msra.mxu0 0.0
  %1181 = vmatprep.subr.mxu0 0.0
  %1182 = vmatpush1.msra.mxu0 0.0
  %1183 = vmatprep.subr.mxu0 0.0
  %1184 = vmatpush1.msra.mxu0 0.0
  %1185 = vmatprep.subr.mxu0 0.0
  %1186 = vmatpush1.msra.mxu0 0.0
  %1187 = vmatprep.subr.mxu0 0.0
  %1188 = vmatpush1.msra.mxu0 0.0
  %1189 = vmatprep.subr.mxu0 0.0
  %1190 = vmatpush1.msra.mxu0 0.0
  %1191 = vmatprep.subr.mxu0 0.0
  %1192 = vmatpush1.msra.mxu0 0.0
  %1193 = vmatprep.subr.mxu0 0.0
  %1194 = vmatpush1.msra.mxu0 0.0
  %1195 = vmatprep.mubr.f32.mxu0 0.0
  %1196 = vmatmul.mubr.f32.gmra.mrb[0].mxu0 %v1129
  %v1197 = vpop.f32.mrb[0].mxu0
  %v1198 = vadd.f32 %v598, %v1197
  %v1199 = vpop.f32.mrb[0].mxu0
  %v1200 = vadd.f32 %v602, %v1199
  %1201 = vdwg.mxu0
  %1202 = vmatprep.subr.mxu0 0.0
  %1203 = vmatpush1.msra.mxu0 %v582
  %1204 = vmatprep.subr.mxu0 0.0
  %1205 = vmatpush1.msra.mxu0 %v585
  %1206 = vmatprep.subr.mxu0 0.0
  %1207 = vmatpush1.msra.mxu0 %v588
  %1208 = vmatprep.subr.mxu0 0.0
  %1209 = vmatpush1.msra.mxu0 %v591
  %1210 = vmatprep.subr.mxu0 0.0
  %1211 = vmatpush1.msra.mxu0 0.0
  %1212 = vmatprep.subr.mxu0 0.0
  %1213 = vmatpush1.msra.mxu0 0.0
  %1214 = vmatprep.subr.mxu0 0.0
  %1215 = vmatpush1.msra.mxu0 0.0
  %1216 = vmatprep.subr.mxu0 0.0
  %1217 = vmatpush1.msra.mxu0 0.0
  %1218 = vmatprep.subr.mxu0 0.0
  %1219 = vmatpush1.msra.mxu0 0.0
  %1220 = vmatprep.subr.mxu0 0.0
  %1221 = vmatpush1.msra.mxu0 0.0
  %1222 = vmatprep.subr.mxu0 0.0
  %1223 = vmatpush1.msra.mxu0 0.0
  %1224 = vmatprep.subr.mxu0 0.0
  %1225 = vmatpush1.msra.mxu0 0.0
  %1226 = vmatprep.subr.mxu0 0.0
  %1227 = vmatpush1.msra.mxu0 0.0
  %1228 = vmatprep.subr.mxu0 0.0
  %1229 = vmatpush1.msra.mxu0 0.0
  %1230 = vmatprep.subr.mxu0 0.0
  %1231 = vmatpush1.msra.mxu0 0.0
  %1232 = vmatprep.subr.mxu0 0.0
  %1233 = vmatpush1.msra.mxu0 0.0
  %1234 = vmatprep.subr.mxu0 0.0
  %1235 = vmatpush1.msra.mxu0 0.0
  %1236 = vmatprep.subr.mxu0 0.0
  %1237 = vmatpush1.msra.mxu0 0.0
  %1238 = vmatprep.subr.mxu0 0.0
  %1239 = vmatpush1.msra.mxu0 0.0
  %1240 = vmatprep.subr.mxu0 0.0
  %1241 = vmatpush1.msra.mxu0 0.0
  %1242 = vmatprep.subr.mxu0 0.0
  %1243 = vmatpush1.msra.mxu0 0.0
  %1244 = vmatprep.subr.mxu0 0.0
  %1245 = vmatpush1.msra.mxu0 0.0
  %1246 = vmatprep.subr.mxu0 0.0
  %1247 = vmatpush1.msra.mxu0 0.0
  %1248 = vmatprep.subr.mxu0 0.0
  %1249 = vmatpush1.msra.mxu0 0.0
  %1250 = vmatprep.subr.mxu0 0.0
  %1251 = vmatpush1.msra.mxu0 0.0
  %1252 = vmatprep.subr.mxu0 0.0
  %1253 = vmatpush1.msra.mxu0 0.0
  %1254 = vmatprep.subr.mxu0 0.0
  %1255 = vmatpush1.msra.mxu0 0.0
  %1256 = vmatprep.subr.mxu0 0.0
  %1257 = vmatpush1.msra.mxu0 0.0
  %1258 = vmatprep.subr.mxu0 0.0
  %1259 = vmatpush1.msra.mxu0 0.0
  %1260 = vmatprep.subr.mxu0 0.0
  %1261 = vmatpush1.msra.mxu0 0.0
  %1262 = vmatprep.subr.mxu0 0.0
  %1263 = vmatpush1.msra.mxu0 0.0
  %1264 = vmatprep.subr.mxu0 0.0
  %1265 = vmatpush1.msra.mxu0 0.0
  %1266 = vmatprep.mubr.f32.mxu0 0.0
  %1267 = vmatmul.mubr.f32.gmra.mrb[0].mxu0 %v1129
  %v1268 = vpop.f32.mrb[0].mxu0
  %v1269 = vadd.f32 %v606, %v1268
  %v1270 = vpop.f32.mrb[0].mxu0
  %1271 = vdwg.mxu0
  %v1272 = vadd.f32 %v1125, %v1198
  %v1273 = vadd.f32 %v1126, %v1200
  %v1274 = vxor.u32 %v1272, 2147483648
  %v1275 = vxor.u32 %v1273, 2147483648
  %v1276 = vmul.f32 %v1274, 1.442695
  %v1277 = vpow.pop %v1276
  %v1278 = vmul.f32 %v1275, 1.442695
  %v1279 = vpow.pop %v1278
  %v1280 = vadd.f32 %v1277, 1.0
  %v1281 = vadd.f32 %v1279, 1.0
  %v1282 = vrcp.pop %v1280
  %v1283 = vmul.f32 1.0, %v1282
  %v1284 = vrcp.pop %v1281
  %v1285 = vmul.f32 1.0, %v1284
  %v1286 = vmul.f32 %v1283, %v1269
  %v1287 = vadd.f32 %v1127, %v1286
  %v1288 = vtanh.pop %v1287
  %v1289 = vsub.f32 1.0, %v1285
  %v1290 = vmul.f32 %v1289, %v1288
  %v1291 = vmul.f32 %v1285, %v1124
  %v1292 = vadd.f32 %v1290, %v1291
  %vm1293 = vcmp.gt.s32.totalorder %v613, 3
  %v1294 = vsel %vm1293, %v1292, %v1124
  %v1295 = vld [vmem:[#allocation2 + $0x60] sm:$0xff]
  %v1296 = vld [vmem:[#allocation2 + $0x68] sm:$0xff]
  %v1297 = vld [vmem:[#allocation2 + $0x70] sm:$0xff]
  %v1299 = vsel %vm617, %v1294, 0
  %1301 = vmatprep.subr.mxu0 %v581
  %1302 = vmatpush1.msra.mxu0 %v580
  %1303 = vmatprep.subr.mxu0 %v584
  %1304 = vmatpush1.msra.mxu0 %v583
  %1305 = vmatprep.subr.mxu0 %v587
  %1306 = vmatpush1.msra.mxu0 %v586
  %1307 = vmatprep.subr.mxu0 %v590
  %1308 = vmatpush1.msra.mxu0 %v589
  %1309 = vmatprep.subr.mxu0 0.0
  %1310 = vmatpush1.msra.mxu0 0.0
  %1311 = vmatprep.subr.mxu0 0.0
  %1312 = vmatpush1.msra.mxu0 0.0
  %1313 = vmatprep.subr.mxu0 0.0
  %1314 = vmatpush1.msra.mxu0 0.0
  %1315 = vmatprep.subr.mxu0 0.0
  %1316 = vmatpush1.msra.mxu0 0.0
  %1317 = vmatprep.subr.mxu0 0.0
  %1318 = vmatpush1.msra.mxu0 0.0
  %1319 = vmatprep.subr.mxu0 0.0
  %1320 = vmatpush1.msra.mxu0 0.0
  %1321 = vmatprep.subr.mxu0 0.0
  %1322 = vmatpush1.msra.mxu0 0.0
  %1323 = vmatprep.subr.mxu0 0.0
  %1324 = vmatpush1.msra.mxu0 0.0
  %1325 = vmatprep.subr.mxu0 0.0
  %1326 = vmatpush1.msra.mxu0 0.0
  %1327 = vmatprep.subr.mxu0 0.0
  %1328 = vmatpush1.msra.mxu0 0.0
  %1329 = vmatprep.subr.mxu0 0.0
  %1330 = vmatpush1.msra.mxu0 0.0
  %1331 = vmatprep.subr.mxu0 0.0
  %1332 = vmatpush1.msra.mxu0 0.0
  %1333 = vmatprep.subr.mxu0 0.0
  %1334 = vmatpush1.msra.mxu0 0.0
  %1335 = vmatprep.subr.mxu0 0.0
  %1336 = vmatpush1.msra.mxu0 0.0
  %1337 = vmatprep.subr.mxu0 0.0
  %1338 = vmatpush1.msra.mxu0 0.0
  %1339 = vmatprep.subr.mxu0 0.0
  %1340 = vmatpush1.msra.mxu0 0.0
  %1341 = vmatprep.subr.mxu0 0.0
  %1342 = vmatpush1.msra.mxu0 0.0
  %1343 = vmatprep.subr.mxu0 0.0
  %1344 = vmatpush1.msra.mxu0 0.0
  %1345 = vmatprep.subr.mxu0 0.0
  %1346 = vmatpush1.msra.mxu0 0.0
  %1347 = vmatprep.subr.mxu0 0.0
  %1348 = vmatpush1.msra.mxu0 0.0
  %1349 = vmatprep.subr.mxu0 0.0
  %1350 = vmatpush1.msra.mxu0 0.0
  %1351 = vmatprep.subr.mxu0 0.0
  %1352 = vmatpush1.msra.mxu0 0.0
  %1353 = vmatprep.subr.mxu0 0.0
  %1354 = vmatpush1.msra.mxu0 0.0
  %1355 = vmatprep.subr.mxu0 0.0
  %1356 = vmatpush1.msra.mxu0 0.0
  %1357 = vmatprep.subr.mxu0 0.0
  %1358 = vmatpush1.msra.mxu0 0.0
  %1359 = vmatprep.subr.mxu0 0.0
  %1360 = vmatpush1.msra.mxu0 0.0
  %1361 = vmatprep.subr.mxu0 0.0
  %1362 = vmatpush1.msra.mxu0 0.0
  %1363 = vmatprep.subr.mxu0 0.0
  %1364 = vmatpush1.msra.mxu0 0.0
  %1365 = vmatprep.mubr.f32.mxu0 0.0
  %1366 = vmatmul.mubr.f32.gmra.mrb[0].mxu0 %v1299
  %v1367 = vpop.f32.mrb[0].mxu0
  %v1368 = vadd.f32 %v598, %v1367
  %v1369 = vpop.f32.mrb[0].mxu0
  %v1370 = vadd.f32 %v602, %v1369
  %1371 = vdwg.mxu0
  %1372 = vmatprep.subr.mxu0 0.0
  %1373 = vmatpush1.msra.mxu0 %v582
  %1374 = vmatprep.subr.mxu0 0.0
  %1375 = vmatpush1.msra.mxu0 %v585
  %1376 = vmatprep.subr.mxu0 0.0
  %1377 = vmatpush1.msra.mxu0 %v588
  %1378 = vmatprep.subr.mxu0 0.0
  %1379 = vmatpush1.msra.mxu0 %v591
  %1380 = vmatprep.subr.mxu0 0.0
  %1381 = vmatpush1.msra.mxu0 0.0
  %1382 = vmatprep.subr.mxu0 0.0
  %1383 = vmatpush1.msra.mxu0 0.0
  %1384 = vmatprep.subr.mxu0 0.0
  %1385 = vmatpush1.msra.mxu0 0.0
  %1386 = vmatprep.subr.mxu0 0.0
  %1387 = vmatpush1.msra.mxu0 0.0
  %1388 = vmatprep.subr.mxu0 0.0
  %1389 = vmatpush1.msra.mxu0 0.0
  %1390 = vmatprep.subr.mxu0 0.0
  %1391 = vmatpush1.msra.mxu0 0.0
  %1392 = vmatprep.subr.mxu0 0.0
  %1393 = vmatpush1.msra.mxu0 0.0
  %1394 = vmatprep.subr.mxu0 0.0
  %1395 = vmatpush1.msra.mxu0 0.0
  %1396 = vmatprep.subr.mxu0 0.0
  %1397 = vmatpush1.msra.mxu0 0.0
  %1398 = vmatprep.subr.mxu0 0.0
  %1399 = vmatpush1.msra.mxu0 0.0
  %1400 = vmatprep.subr.mxu0 0.0
  %1401 = vmatpush1.msra.mxu0 0.0
  %1402 = vmatprep.subr.mxu0 0.0
  %1403 = vmatpush1.msra.mxu0 0.0
  %1404 = vmatprep.subr.mxu0 0.0
  %1405 = vmatpush1.msra.mxu0 0.0
  %1406 = vmatprep.subr.mxu0 0.0
  %1407 = vmatpush1.msra.mxu0 0.0
  %1408 = vmatprep.subr.mxu0 0.0
  %1409 = vmatpush1.msra.mxu0 0.0
  %1410 = vmatprep.subr.mxu0 0.0
  %1411 = vmatpush1.msra.mxu0 0.0
  %1412 = vmatprep.subr.mxu0 0.0
  %1413 = vmatpush1.msra.mxu0 0.0
  %1414 = vmatprep.subr.mxu0 0.0
  %1415 = vmatpush1.msra.mxu0 0.0
  %1416 = vmatprep.subr.mxu0 0.0
  %1417 = vmatpush1.msra.mxu0 0.0
  %1418 = vmatprep.subr.mxu0 0.0
  %1419 = vmatpush1.msra.mxu0 0.0
  %1420 = vmatprep.subr.mxu0 0.0
  %1421 = vmatpush1.msra.mxu0 0.0
  %1422 = vmatprep.subr.mxu0 0.0
  %1423 = vmatpush1.msra.mxu0 0.0
  %1424 = vmatprep.subr.mxu0 0.0
  %1425 = vmatpush1.msra.mxu0 0.0
  %1426 = vmatprep.subr.mxu0 0.0
  %1427 = vmatpush1.msra.mxu0 0.0
  %1428 = vmatprep.subr.mxu0 0.0
  %1429 = vmatpush1.msra.mxu0 0.0
  %1430 = vmatprep.subr.mxu0 0.0
  %1431 = vmatpush1.msra.mxu0 0.0
  %1432 = vmatprep.subr.mxu0 0.0
  %1433 = vmatpush1.msra.mxu0 0.0
  %1434 = vmatprep.subr.mxu0 0.0
  %1435 = vmatpush1.msra.mxu0 0.0
  %1436 = vmatprep.mubr.f32.mxu0 0.0
  %1437 = vmatmul.mubr.f32.gmra.mrb[0].mxu0 %v1299
  %v1438 = vpop.f32.mrb[0].mxu0
  %v1439 = vadd.f32 %v606, %v1438
  %v1440 = vpop.f32.mrb[0].mxu0
  %1441 = vdwg.mxu0
  %v1442 = vadd.f32 %v1295, %v1368
  %v1443 = vadd.f32 %v1296, %v1370
  %v1444 = vxor.u32 %v1442, 2147483648
  %v1445 = vxor.u32 %v1443, 2147483648
  %v1446 = vmul.f32 %v1444, 1.442695
  %v1447 = vpow.pop %v1446
  %v1448 = vmul.f32 %v1445, 1.442695
  %v1449 = vpow.pop %v1448
  %v1450 = vadd.f32 %v1447, 1.0
  %v1451 = vadd.f32 %v1449, 1.0
  %v1452 = vrcp.pop %v1450
  %v1453 = vmul.f32 1.0, %v1452
  %v1454 = vrcp.pop %v1451
  %v1455 = vmul.f32 1.0, %v1454
  %v1456 = vmul.f32 %v1453, %v1439
  %v1457 = vadd.f32 %v1297, %v1456
  %v1458 = vtanh.pop %v1457
  %v1459 = vsub.f32 1.0, %v1455
  %v1460 = vmul.f32 %v1459, %v1458
  %v1461 = vmul.f32 %v1455, %v1294
  %v1462 = vadd.f32 %v1460, %v1461
  %vm1463 = vcmp.gt.s32.totalorder %v613, 4
  %v1464 = vsel %vm1463, %v1462, %v1294
  %v1465 = vld [vmem:[#allocation2 + $0x78] sm:$0xff]
  %v1466 = vld [vmem:[#allocation2 + $0x80] sm:$0xff]
  %v1467 = vld [vmem:[#allocation2 + $0x88] sm:$0xff]
  %v1469 = vsel %vm617, %v1464, 0
  %1471 = vmatprep.subr.mxu0 %v581
  %1472 = vmatpush1.msra.mxu0 %v580
  %1473 = vmatprep.subr.mxu0 %v584
  %1474 = vmatpush1.msra.mxu0 %v583
  %1475 = vmatprep.subr.mxu0 %v587
  %1476 = vmatpush1.msra.mxu0 %v586
  %1477 = vmatprep.subr.mxu0 %v590
  %1478 = vmatpush1.msra.mxu0 %v589
  %1479 = vmatprep.subr.mxu0 0.0
  %1480 = vmatpush1.msra.mxu0 0.0
  %1481 = vmatprep.subr.mxu0 0.0
  %1482 = vmatpush1.msra.mxu0 0.0
  %1483 = vmatprep.subr.mxu0 0.0
  %1484 = vmatpush1.msra.mxu0 0.0
  %1485 = vmatprep.subr.mxu0 0.0
  %1486 = vmatpush1.msra.mxu0 0.0
  %1487 = vmatprep.subr.mxu0 0.0
  %1488 = vmatpush1.msra.mxu0 0.0
  %1489 = vmatprep.subr.mxu0 0.0
  %1490 = vmatpush1.msra.mxu0 0.0
  %1491 = vmatprep.subr.mxu0 0.0
  %1492 = vmatpush1.msra.mxu0 0.0
  %1493 = vmatprep.subr.mxu0 0.0
  %1494 = vmatpush1.msra.mxu0 0.0
  %1495 = vmatprep.subr.mxu0 0.0
  %1496 = vmatpush1.msra.mxu0 0.0
  %1497 = vmatprep.subr.mxu0 0.0
  %1498 = vmatpush1.msra.mxu0 0.0
  %1499 = vmatprep.subr.mxu0 0.0
  %1500 = vmatpush1.msra.mxu0 0.0
  %1501 = vmatprep.subr.mxu0 0.0
  %1502 = vmatpush1.msra.mxu0 0.0
  %1503 = vmatprep.subr.mxu0 0.0
  %1504 = vmatpush1.msra.mxu0 0.0
  %1505 = vmatprep.subr.mxu0 0.0
  %1506 = vmatpush1.msra.mxu0 0.0
  %1507 = vmatprep.subr.mxu0 0.0
  %1508 = vmatpush1.msra.mxu0 0.0
  %1509 = vmatprep.subr.mxu0 0.0
  %1510 = vmatpush1.msra.mxu0 0.0
  %1511 = vmatprep.subr.mxu0 0.0
  %1512 = vmatpush1.msra.mxu0 0.0
  %1513 = vmatprep.subr.mxu0 0.0
  %1514 = vmatpush1.msra.mxu0 0.0
  %1515 = vmatprep.subr.mxu0 0.0
  %1516 = vmatpush1.msra.mxu0 0.0
  %1517 = vmatprep.subr.mxu0 0.0
  %1518 = vmatpush1.msra.mxu0 0.0
  %1519 = vmatprep.subr.mxu0 0.0
  %1520 = vmatpush1.msra.mxu0 0.0
  %1521 = vmatprep.subr.mxu0 0.0
  %1522 = vmatpush1.msra.mxu0 0.0
  %1523 = vmatprep.subr.mxu0 0.0
  %1524 = vmatpush1.msra.mxu0 0.0
  %1525 = vmatprep.subr.mxu0 0.0
  %1526 = vmatpush1.msra.mxu0 0.0
  %1527 = vmatprep.subr.mxu0 0.0
  %1528 = vmatpush1.msra.mxu0 0.0
  %1529 = vmatprep.subr.mxu0 0.0
  %1530 = vmatpush1.msra.mxu0 0.0
  %1531 = vmatprep.subr.mxu0 0.0
  %1532 = vmatpush1.msra.mxu0 0.0
  %1533 = vmatprep.subr.mxu0 0.0
  %1534 = vmatpush1.msra.mxu0 0.0
  %1535 = vmatprep.mubr.f32.mxu0 0.0
  %1536 = vmatmul.mubr.f32.gmra.mrb[0].mxu0 %v1469
  %v1537 = vpop.f32.mrb[0].mxu0
  %v1538 = vadd.f32 %v598, %v1537
  %v1539 = vpop.f32.mrb[0].mxu0
  %v1540 = vadd.f32 %v602, %v1539
  %1541 = vdwg.mxu0
  %1542 = vmatprep.subr.mxu0 0.0
  %1543 = vmatpush1.msra.mxu0 %v582
  %1544 = vmatprep.subr.mxu0 0.0
  %1545 = vmatpush1.msra.mxu0 %v585
  %1546 = vmatprep.subr.mxu0 0.0
  %1547 = vmatpush1.msra.mxu0 %v588
  %1548 = vmatprep.subr.mxu0 0.0
  %1549 = vmatpush1.msra.mxu0 %v591
  %1550 = vmatprep.subr.mxu0 0.0
  %1551 = vmatpush1.msra.mxu0 0.0
  %1552 = vmatprep.subr.mxu0 0.0
  %1553 = vmatpush1.msra.mxu0 0.0
  %1554 = vmatprep.subr.mxu0 0.0
  %1555 = vmatpush1.msra.mxu0 0.0
  %1556 = vmatprep.subr.mxu0 0.0
  %1557 = vmatpush1.msra.mxu0 0.0
  %1558 = vmatprep.subr.mxu0 0.0
  %1559 = vmatpush1.msra.mxu0 0.0
  %1560 = vmatprep.subr.mxu0 0.0
  %1561 = vmatpush1.msra.mxu0 0.0
  %1562 = vmatprep.subr.mxu0 0.0
  %1563 = vmatpush1.msra.mxu0 0.0
  %1564 = vmatprep.subr.mxu0 0.0
  %1565 = vmatpush1.msra.mxu0 0.0
  %1566 = vmatprep.subr.mxu0 0.0
  %1567 = vmatpush1.msra.mxu0 0.0
  %1568 = vmatprep.subr.mxu0 0.0
  %1569 = vmatpush1.msra.mxu0 0.0
  %1570 = vmatprep.subr.mxu0 0.0
  %1571 = vmatpush1.msra.mxu0 0.0
  %1572 = vmatprep.subr.mxu0 0.0
  %1573 = vmatpush1.msra.mxu0 0.0
  %1574 = vmatprep.subr.mxu0 0.0
  %1575 = vmatpush1.msra.mxu0 0.0
  %1576 = vmatprep.subr.mxu0 0.0
  %1577 = vmatpush1.msra.mxu0 0.0
  %1578 = vmatprep.subr.mxu0 0.0
  %1579 = vmatpush1.msra.mxu0 0.0
  %1580 = vmatprep.subr.mxu0 0.0
  %1581 = vmatpush1.msra.mxu0 0.0
  %1582 = vmatprep.subr.mxu0 0.0
  %1583 = vmatpush1.msra.mxu0 0.0
  %1584 = vmatprep.subr.mxu0 0.0
  %1585 = vmatpush1.msra.mxu0 0.0
  %1586 = vmatprep.subr.mxu0 0.0
  %1587 = vmatpush1.msra.mxu0 0.0
  %1588 = vmatprep.subr.mxu0 0.0
  %1589 = vmatpush1.msra.mxu0 0.0
  %1590 = vmatprep.subr.mxu0 0.0
  %1591 = vmatpush1.msra.mxu0 0.0
  %1592 = vmatprep.subr.mxu0 0.0
  %1593 = vmatpush1.msra.mxu0 0.0
  %1594 = vmatprep.subr.mxu0 0.0
  %1595 = vmatpush1.msra.mxu0 0.0
  %1596 = vmatprep.subr.mxu0 0.0
  %1597 = vmatpush1.msra.mxu0 0.0
  %1598 = vmatprep.subr.mxu0 0.0
  %1599 = vmatpush1.msra.mxu0 0.0
  %1600 = vmatprep.subr.mxu0 0.0
  %1601 = vmatpush1.msra.mxu0 0.0
  %1602 = vmatprep.subr.mxu0 0.0
  %1603 = vmatpush1.msra.mxu0 0.0
  %1604 = vmatprep.subr.mxu0 0.0
  %1605 = vmatpush1.msra.mxu0 0.0
  %1606 = vmatprep.mubr.f32.mxu0 0.0
  %1607 = vmatmul.mubr.f32.gmra.mrb[0].mxu0 %v1469
  %v1608 = vpop.f32.mrb[0].mxu0
  %v1609 = vadd.f32 %v606, %v1608
  %v1610 = vpop.f32.mrb[0].mxu0
  %1611 = vdwg.mxu0
  %v1612 = vadd.f32 %v1465, %v1538
  %v1613 = vadd.f32 %v1466, %v1540
  %v1614 = vxor.u32 %v1612, 2147483648
  %v1615 = vxor.u32 %v1613, 2147483648
  %v1616 = vmul.f32 %v1614, 1.442695
  %v1617 = vpow.pop %v1616
  %v1618 = vmul.f32 %v1615, 1.442695
  %v1619 = vpow.pop %v1618
  %v1620 = vadd.f32 %v1617, 1.0
  %v1621 = vadd.f32 %v1619, 1.0
  %v1622 = vrcp.pop %v1620
  %v1623 = vmul.f32 1.0, %v1622
  %v1624 = vrcp.pop %v1621
  %v1625 = vmul.f32 1.0, %v1624
  %v1626 = vmul.f32 %v1623, %v1609
  %v1627 = vadd.f32 %v1467, %v1626
  %v1628 = vtanh.pop %v1627
  %v1629 = vsub.f32 1.0, %v1625
  %v1630 = vmul.f32 %v1629, %v1628
  %v1631 = vmul.f32 %v1625, %v1464
  %v1632 = vadd.f32 %v1630, %v1631
  %vm1633 = vcmp.gt.s32.totalorder %v613, 5
  %v1634 = vsel %vm1633, %v1632, %v1464
  %v1635 = vld [vmem:[#allocation2 + $0x90] sm:$0xff]
  %v1636 = vld [vmem:[#allocation2 + $0x98] sm:$0xff]
  %v1637 = vld [vmem:[#allocation2 + $0xa0] sm:$0xff]
  %v1639 = vsel %vm617, %v1634, 0
  %1641 = vmatprep.subr.mxu0 %v581
  %1642 = vmatpush1.msra.mxu0 %v580
  %1643 = vmatprep.subr.mxu0 %v584
  %1644 = vmatpush1.msra.mxu0 %v583
  %1645 = vmatprep.subr.mxu0 %v587
  %1646 = vmatpush1.msra.mxu0 %v586
  %1647 = vmatprep.subr.mxu0 %v590
  %1648 = vmatpush1.msra.mxu0 %v589
  %1649 = vmatprep.subr.mxu0 0.0
  %1650 = vmatpush1.msra.mxu0 0.0
  %1651 = vmatprep.subr.mxu0 0.0
  %1652 = vmatpush1.msra.mxu0 0.0
  %1653 = vmatprep.subr.mxu0 0.0
  %1654 = vmatpush1.msra.mxu0 0.0
  %1655 = vmatprep.subr.mxu0 0.0
  %1656 = vmatpush1.msra.mxu0 0.0
  %1657 = vmatprep.subr.mxu0 0.0
  %1658 = vmatpush1.msra.mxu0 0.0
  %1659 = vmatprep.subr.mxu0 0.0
  %1660 = vmatpush1.msra.mxu0 0.0
  %1661 = vmatprep.subr.mxu0 0.0
  %1662 = vmatpush1.msra.mxu0 0.0
  %1663 = vmatprep.subr.mxu0 0.0
  %1664 = vmatpush1.msra.mxu0 0.0
  %1665 = vmatprep.subr.mxu0 0.0
  %1666 = vmatpush1.msra.mxu0 0.0
  %1667 = vmatprep.subr.mxu0 0.0
  %1668 = vmatpush1.msra.mxu0 0.0
  %1669 = vmatprep.subr.mxu0 0.0
  %1670 = vmatpush1.msra.mxu0 0.0
  %1671 = vmatprep.subr.mxu0 0.0
  %1672 = vmatpush1.msra.mxu0 0.0
  %1673 = vmatprep.subr.mxu0 0.0
  %1674 = vmatpush1.msra.mxu0 0.0
  %1675 = vmatprep.subr.mxu0 0.0
  %1676 = vmatpush1.msra.mxu0 0.0
  %1677 = vmatprep.subr.mxu0 0.0
  %1678 = vmatpush1.msra.mxu0 0.0
  %1679 = vmatprep.subr.mxu0 0.0
  %1680 = vmatpush1.msra.mxu0 0.0
  %1681 = vmatprep.subr.mxu0 0.0
  %1682 = vmatpush1.msra.mxu0 0.0
  %1683 = vmatprep.subr.mxu0 0.0
  %1684 = vmatpush1.msra.mxu0 0.0
  %1685 = vmatprep.subr.mxu0 0.0
  %1686 = vmatpush1.msra.mxu0 0.0
  %1687 = vmatprep.subr.mxu0 0.0
  %1688 = vmatpush1.msra.mxu0 0.0
  %1689 = vmatprep.subr.mxu0 0.0
  %1690 = vmatpush1.msra.mxu0 0.0
  %1691 = vmatprep.subr.mxu0 0.0
  %1692 = vmatpush1.msra.mxu0 0.0
  %1693 = vmatprep.subr.mxu0 0.0
  %1694 = vmatpush1.msra.mxu0 0.0
  %1695 = vmatprep.subr.mxu0 0.0
  %1696 = vmatpush1.msra.mxu0 0.0
  %1697 = vmatprep.subr.mxu0 0.0
  %1698 = vmatpush1.msra.mxu0 0.0
  %1699 = vmatprep.subr.mxu0 0.0
  %1700 = vmatpush1.msra.mxu0 0.0
  %1701 = vmatprep.subr.mxu0 0.0
  %1702 = vmatpush1.msra.mxu0 0.0
  %1703 = vmatprep.subr.mxu0 0.0
  %1704 = vmatpush1.msra.mxu0 0.0
  %1705 = vmatprep.mubr.f32.mxu0 0.0
  %1706 = vmatmul.mubr.f32.gmra.mrb[0].mxu0 %v1639
  %v1707 = vpop.f32.mrb[0].mxu0
  %v1708 = vadd.f32 %v598, %v1707
  %v1709 = vpop.f32.mrb[0].mxu0
  %v1710 = vadd.f32 %v602, %v1709
  %1711 = vdwg.mxu0
  %1712 = vmatprep.subr.mxu0 0.0
  %1713 = vmatpush1.msra.mxu0 %v582
  %1714 = vmatprep.subr.mxu0 0.0
  %1715 = vmatpush1.msra.mxu0 %v585
  %1716 = vmatprep.subr.mxu0 0.0
  %1717 = vmatpush1.msra.mxu0 %v588
  %1718 = vmatprep.subr.mxu0 0.0
  %1719 = vmatpush1.msra.mxu0 %v591
  %1720 = vmatprep.subr.mxu0 0.0
  %1721 = vmatpush1.msra.mxu0 0.0
  %1722 = vmatprep.subr.mxu0 0.0
  %1723 = vmatpush1.msra.mxu0 0.0
  %1724 = vmatprep.subr.mxu0 0.0
  %1725 = vmatpush1.msra.mxu0 0.0
  %1726 = vmatprep.subr.mxu0 0.0
  %1727 = vmatpush1.msra.mxu0 0.0
  %1728 = vmatprep.subr.mxu0 0.0
  %1729 = vmatpush1.msra.mxu0 0.0
  %1730 = vmatprep.subr.mxu0 0.0
  %1731 = vmatpush1.msra.mxu0 0.0
  %1732 = vmatprep.subr.mxu0 0.0
  %1733 = vmatpush1.msra.mxu0 0.0
  %1734 = vmatprep.subr.mxu0 0.0
  %1735 = vmatpush1.msra.mxu0 0.0
  %1736 = vmatprep.subr.mxu0 0.0
  %1737 = vmatpush1.msra.mxu0 0.0
  %1738 = vmatprep.subr.mxu0 0.0
  %1739 = vmatpush1.msra.mxu0 0.0
  %1740 = vmatprep.subr.mxu0 0.0
  %1741 = vmatpush1.msra.mxu0 0.0
  %1742 = vmatprep.subr.mxu0 0.0
  %1743 = vmatpush1.msra.mxu0 0.0
  %1744 = vmatprep.subr.mxu0 0.0
  %1745 = vmatpush1.msra.mxu0 0.0
  %1746 = vmatprep.subr.mxu0 0.0
  %1747 = vmatpush1.msra.mxu0 0.0
  %1748 = vmatprep.subr.mxu0 0.0
  %1749 = vmatpush1.msra.mxu0 0.0
  %1750 = vmatprep.subr.mxu0 0.0
  %1751 = vmatpush1.msra.mxu0 0.0
  %1752 = vmatprep.subr.mxu0 0.0
  %1753 = vmatpush1.msra.mxu0 0.0
  %1754 = vmatprep.subr.mxu0 0.0
  %1755 = vmatpush1.msra.mxu0 0.0
  %1756 = vmatprep.subr.mxu0 0.0
  %1757 = vmatpush1.msra.mxu0 0.0
  %1758 = vmatprep.subr.mxu0 0.0
  %1759 = vmatpush1.msra.mxu0 0.0
  %1760 = vmatprep.subr.mxu0 0.0
  %1761 = vmatpush1.msra.mxu0 0.0
  %1762 = vmatprep.subr.mxu0 0.0
  %1763 = vmatpush1.msra.mxu0 0.0
  %1764 = vmatprep.subr.mxu0 0.0
  %1765 = vmatpush1.msra.mxu0 0.0
  %1766 = vmatprep.subr.mxu0 0.0
  %1767 = vmatpush1.msra.mxu0 0.0
  %1768 = vmatprep.subr.mxu0 0.0
  %1769 = vmatpush1.msra.mxu0 0.0
  %1770 = vmatprep.subr.mxu0 0.0
  %1771 = vmatpush1.msra.mxu0 0.0
  %1772 = vmatprep.subr.mxu0 0.0
  %1773 = vmatpush1.msra.mxu0 0.0
  %1774 = vmatprep.subr.mxu0 0.0
  %1775 = vmatpush1.msra.mxu0 0.0
  %1776 = vmatprep.mubr.f32.mxu0 0.0
  %1777 = vmatmul.mubr.f32.gmra.mrb[0].mxu0 %v1639
  %v1778 = vpop.f32.mrb[0].mxu0
  %v1779 = vadd.f32 %v606, %v1778
  %v1780 = vpop.f32.mrb[0].mxu0
  %1781 = vdwg.mxu0
  %v1782 = vadd.f32 %v1635, %v1708
  %v1783 = vadd.f32 %v1636, %v1710
  %v1784 = vxor.u32 %v1782, 2147483648
  %v1785 = vxor.u32 %v1783, 2147483648
  %v1786 = vmul.f32 %v1784, 1.442695
  %v1787 = vpow.pop %v1786
  %v1788 = vmul.f32 %v1785, 1.442695
  %v1789 = vpow.pop %v1788
  %v1790 = vadd.f32 %v1787, 1.0
  %v1791 = vadd.f32 %v1789, 1.0
  %v1792 = vrcp.pop %v1790
  %v1793 = vmul.f32 1.0, %v1792
  %v1794 = vrcp.pop %v1791
  %v1795 = vmul.f32 1.0, %v1794
  %v1796 = vmul.f32 %v1793, %v1779
  %v1797 = vadd.f32 %v1637, %v1796
  %v1798 = vtanh.pop %v1797
  %v1799 = vsub.f32 1.0, %v1795
  %v1800 = vmul.f32 %v1799, %v1798
  %v1801 = vmul.f32 %v1795, %v1634
  %v1802 = vadd.f32 %v1800, %v1801
  %vm1803 = vcmp.gt.s32.totalorder %v613, 6
  %v1804 = vsel %vm1803, %v1802, %v1634
  %v1805 = vld [vmem:[#allocation2 + $0xa8] sm:$0xff]
  %v1806 = vld [vmem:[#allocation2 + $0xb0] sm:$0xff]
  %v1807 = vld [vmem:[#allocation2 + $0xb8] sm:$0xff]
  %v1809 = vsel %vm617, %v1804, 0
  %1811 = vmatprep.subr.mxu0 %v581
  %1812 = vmatpush1.msra.mxu0 %v580
  %1813 = vmatprep.subr.mxu0 %v584
  %1814 = vmatpush1.msra.mxu0 %v583
  %1815 = vmatprep.subr.mxu0 %v587
  %1816 = vmatpush1.msra.mxu0 %v586
  %1817 = vmatprep.subr.mxu0 %v590
  %1818 = vmatpush1.msra.mxu0 %v589
  %1819 = vmatprep.subr.mxu0 0.0
  %1820 = vmatpush1.msra.mxu0 0.0
  %1821 = vmatprep.subr.mxu0 0.0
  %1822 = vmatpush1.msra.mxu0 0.0
  %1823 = vmatprep.subr.mxu0 0.0
  %1824 = vmatpush1.msra.mxu0 0.0
  %1825 = vmatprep.subr.mxu0 0.0
  %1826 = vmatpush1.msra.mxu0 0.0
  %1827 = vmatprep.subr.mxu0 0.0
  %1828 = vmatpush1.msra.mxu0 0.0
  %1829 = vmatprep.subr.mxu0 0.0
  %1830 = vmatpush1.msra.mxu0 0.0
  %1831 = vmatprep.subr.mxu0 0.0
  %1832 = vmatpush1.msra.mxu0 0.0
  %1833 = vmatprep.subr.mxu0 0.0
  %1834 = vmatpush1.msra.mxu0 0.0
  %1835 = vmatprep.subr.mxu0 0.0
  %1836 = vmatpush1.msra.mxu0 0.0
  %1837 = vmatprep.subr.mxu0 0.0
  %1838 = vmatpush1.msra.mxu0 0.0
  %1839 = vmatprep.subr.mxu0 0.0
  %1840 = vmatpush1.msra.mxu0 0.0
  %1841 = vmatprep.subr.mxu0 0.0
  %1842 = vmatpush1.msra.mxu0 0.0
  %1843 = vmatprep.subr.mxu0 0.0
  %1844 = vmatpush1.msra.mxu0 0.0
  %1845 = vmatprep.subr.mxu0 0.0
  %1846 = vmatpush1.msra.mxu0 0.0
  %1847 = vmatprep.subr.mxu0 0.0
  %1848 = vmatpush1.msra.mxu0 0.0
  %1849 = vmatprep.subr.mxu0 0.0
  %1850 = vmatpush1.msra.mxu0 0.0
  %1851 = vmatprep.subr.mxu0 0.0
  %1852 = vmatpush1.msra.mxu0 0.0
  %1853 = vmatprep.subr.mxu0 0.0
  %1854 = vmatpush1.msra.mxu0 0.0
  %1855 = vmatprep.subr.mxu0 0.0
  %1856 = vmatpush1.msra.mxu0 0.0
  %1857 = vmatprep.subr.mxu0 0.0
  %1858 = vmatpush1.msra.mxu0 0.0
  %1859 = vmatprep.subr.mxu0 0.0
  %1860 = vmatpush1.msra.mxu0 0.0
  %1861 = vmatprep.subr.mxu0 0.0
  %1862 = vmatpush1.msra.mxu0 0.0
  %1863 = vmatprep.subr.mxu0 0.0
  %1864 = vmatpush1.msra.mxu0 0.0
  %1865 = vmatprep.subr.mxu0 0.0
  %1866 = vmatpush1.msra.mxu0 0.0
  %1867 = vmatprep.subr.mxu0 0.0
  %1868 = vmatpush1.msra.mxu0 0.0
  %1869 = vmatprep.subr.mxu0 0.0
  %1870 = vmatpush1.msra.mxu0 0.0
  %1871 = vmatprep.subr.mxu0 0.0
  %1872 = vmatpush1.msra.mxu0 0.0
  %1873 = vmatprep.subr.mxu0 0.0
  %1874 = vmatpush1.msra.mxu0 0.0
  %1875 = vmatprep.mubr.f32.mxu0 0.0
  %1876 = vmatmul.mubr.f32.gmra.mrb[0].mxu0 %v1809
  %v1877 = vpop.f32.mrb[0].mxu0
  %v1878 = vadd.f32 %v598, %v1877
  %v1879 = vpop.f32.mrb[0].mxu0
  %v1880 = vadd.f32 %v602, %v1879
  %1881 = vdwg.mxu0
  %1882 = vmatprep.subr.mxu0 0.0
  %1883 = vmatpush1.msra.mxu0 %v582
  %1884 = vmatprep.subr.mxu0 0.0
  %1885 = vmatpush1.msra.mxu0 %v585
  %1886 = vmatprep.subr.mxu0 0.0
  %1887 = vmatpush1.msra.mxu0 %v588
  %1888 = vmatprep.subr.mxu0 0.0
  %1889 = vmatpush1.msra.mxu0 %v591
  %1890 = vmatprep.subr.mxu0 0.0
  %1891 = vmatpush1.msra.mxu0 0.0
  %1892 = vmatprep.subr.mxu0 0.0
  %1893 = vmatpush1.msra.mxu0 0.0
  %1894 = vmatprep.subr.mxu0 0.0
  %1895 = vmatpush1.msra.mxu0 0.0
  %1896 = vmatprep.subr.mxu0 0.0
  %1897 = vmatpush1.msra.mxu0 0.0
  %1898 = vmatprep.subr.mxu0 0.0
  %1899 = vmatpush1.msra.mxu0 0.0
  %1900 = vmatprep.subr.mxu0 0.0
  %1901 = vmatpush1.msra.mxu0 0.0
  %1902 = vmatprep.subr.mxu0 0.0
  %1903 = vmatpush1.msra.mxu0 0.0
  %1904 = vmatprep.subr.mxu0 0.0
  %1905 = vmatpush1.msra.mxu0 0.0
  %1906 = vmatprep.subr.mxu0 0.0
  %1907 = vmatpush1.msra.mxu0 0.0
  %1908 = vmatprep.subr.mxu0 0.0
  %1909 = vmatpush1.msra.mxu0 0.0
  %1910 = vmatprep.subr.mxu0 0.0
  %1911 = vmatpush1.msra.mxu0 0.0
  %1912 = vmatprep.subr.mxu0 0.0
  %1913 = vmatpush1.msra.mxu0 0.0
  %1914 = vmatprep.subr.mxu0 0.0
  %1915 = vmatpush1.msra.mxu0 0.0
  %1916 = vmatprep.subr.mxu0 0.0
  %1917 = vmatpush1.msra.mxu0 0.0
  %1918 = vmatprep.subr.mxu0 0.0
  %1919 = vmatpush1.msra.mxu0 0.0
  %1920 = vmatprep.subr.mxu0 0.0
  %1921 = vmatpush1.msra.mxu0 0.0
  %1922 = vmatprep.subr.mxu0 0.0
  %1923 = vmatpush1.msra.mxu0 0.0
  %1924 = vmatprep.subr.mxu0 0.0
  %1925 = vmatpush1.msra.mxu0 0.0
  %1926 = vmatprep.subr.mxu0 0.0
  %1927 = vmatpush1.msra.mxu0 0.0
  %1928 = vmatprep.subr.mxu0 0.0
  %1929 = vmatpush1.msra.mxu0 0.0
  %1930 = vmatprep.subr.mxu0 0.0
  %1931 = vmatpush1.msra.mxu0 0.0
  %1932 = vmatprep.subr.mxu0 0.0
  %1933 = vmatpush1.msra.mxu0 0.0
  %1934 = vmatprep.subr.mxu0 0.0
  %1935 = vmatpush1.msra.mxu0 0.0
  %1936 = vmatprep.subr.mxu0 0.0
  %1937 = vmatpush1.msra.mxu0 0.0
  %1938 = vmatprep.subr.mxu0 0.0
  %1939 = vmatpush1.msra.mxu0 0.0
  %1940 = vmatprep.subr.mxu0 0.0
  %1941 = vmatpush1.msra.mxu0 0.0
  %1942 = vmatprep.subr.mxu0 0.0
  %1943 = vmatpush1.msra.mxu0 0.0
  %1944 = vmatprep.subr.mxu0 0.0
  %1945 = vmatpush1.msra.mxu0 0.0
  %1946 = vmatprep.mubr.f32.mxu0 0.0
  %1947 = vmatmul.mubr.f32.gmra.mrb[0].mxu0 %v1809
  %v1948 = vpop.f32.mrb[0].mxu0
  %v1949 = vadd.f32 %v606, %v1948
  %v1950 = vpop.f32.mrb[0].mxu0
  %1951 = vdwg.mxu0
  %v1952 = vadd.f32 %v1805, %v1878
  %v1953 = vadd.f32 %v1806, %v1880
  %v1954 = vxor.u32 %v1952, 2147483648
  %v1955 = vxor.u32 %v1953, 2147483648
  %v1956 = vmul.f32 %v1954, 1.442695
  %v1957 = vpow.pop %v1956
  %v1958 = vmul.f32 %v1955, 1.442695
  %v1959 = vpow.pop %v1958
  %v1960 = vadd.f32 %v1957, 1.0
  %v1961 = vadd.f32 %v1959, 1.0
  %v1962 = vrcp.pop %v1960
  %v1963 = vmul.f32 1.0, %v1962
  %v1964 = vrcp.pop %v1961
  %v1965 = vmul.f32 1.0, %v1964
  %v1966 = vmul.f32 %v1963, %v1949
  %v1967 = vadd.f32 %v1807, %v1966
  %v1968 = vtanh.pop %v1967
  %v1969 = vsub.f32 1.0, %v1965
  %v1970 = vmul.f32 %v1969, %v1968
  %v1971 = vmul.f32 %v1965, %v1804
  %v1972 = vadd.f32 %v1970, %v1971
  %vm1973 = vcmp.gt.s32.totalorder %v613, 7
  %v1974 = vsel %vm1973, %v1972, %v1804
  %1975 = vset.pattern.permute.xlu0 1
  %1976 = vperm.xlu0 %1975, %v610
  %v1977 = vpop.permute.xlu0 %1976
  %vm1978 = vcmp.eq.s32.totalorder %v1977, %v264
  %v1979 = vsel %vm1978, 1, 0
  %v1980 = vcvt.s32.f32 %v1979
  %v1981 = vld [vmem:[%s3 + $0x18] sm:$0xff]
  %vm1982 = vcmask 64512
  %v1984 = vsel %vm1982, %v1980, 0
  %1986 = vmatprep.subr.mxu0 0.0
  %1987 = vmatpush1.msra.mxu0 %v1981
  %1988 = vmatprep.subr.mxu0 0.0
  %1989 = vmatpush1.msra.mxu0 0.0
  %1990 = vmatprep.subr.mxu0 0.0
  %1991 = vmatpush1.msra.mxu0 0.0
  %1992 = vmatprep.subr.mxu0 0.0
  %1993 = vmatpush1.msra.mxu0 0.0
  %1994 = vmatprep.subr.mxu0 0.0
  %1995 = vmatpush1.msra.mxu0 0.0
  %1996 = vmatprep.subr.mxu0 0.0
  %1997 = vmatpush1.msra.mxu0 0.0
  %1998 = vmatprep.subr.mxu0 0.0
  %1999 = vmatpush1.msra.mxu0 0.0
  %2000 = vmatprep.subr.mxu0 0.0
  %2001 = vmatpush1.msra.mxu0 0.0
  %2002 = vmatprep.subr.mxu0 0.0
  %2003 = vmatpush1.msra.mxu0 0.0
  %2004 = vmatprep.subr.mxu0 0.0
  %2005 = vmatpush1.msra.mxu0 0.0
  %2006 = vmatprep.subr.mxu0 0.0
  %2007 = vmatpush1.msra.mxu0 0.0
  %2008 = vmatprep.subr.mxu0 0.0
  %2009 = vmatpush1.msra.mxu0 0.0
  %2010 = vmatprep.subr.mxu0 0.0
  %2011 = vmatpush1.msra.mxu0 0.0
  %2012 = vmatprep.subr.mxu0 0.0
  %2013 = vmatpush1.msra.mxu0 0.0
  %2014 = vmatprep.subr.mxu0 0.0
  %2015 = vmatpush1.msra.mxu0 0.0
  %2016 = vmatprep.subr.mxu0 0.0
  %2017 = vmatpush1.msra.mxu0 0.0
  %2018 = vmatprep.subr.mxu0 0.0
  %2019 = vmatpush1.msra.mxu0 0.0
  %2020 = vmatprep.subr.mxu0 0.0
  %2021 = vmatpush1.msra.mxu0 0.0
  %2022 = vmatprep.subr.mxu0 0.0
  %2023 = vmatpush1.msra.mxu0 0.0
  %2024 = vmatprep.subr.mxu0 0.0
  %2025 = vmatpush1.msra.mxu0 0.0
  %2026 = vmatprep.subr.mxu0 0.0
  %2027 = vmatpush1.msra.mxu0 0.0
  %2028 = vmatprep.subr.mxu0 0.0
  %2029 = vmatpush1.msra.mxu0 0.0
  %2030 = vmatprep.subr.mxu0 0.0
  %2031 = vmatpush1.msra.mxu0 0.0
  %2032 = vmatprep.subr.mxu0 0.0
  %2033 = vmatpush1.msra.mxu0 0.0
  %2034 = vmatprep.subr.mxu0 0.0
  %2035 = vmatpush1.msra.mxu0 0.0
  %2036 = vmatprep.subr.mxu0 0.0
  %2037 = vmatpush1.msra.mxu0 0.0
  %2038 = vmatprep.subr.mxu0 0.0
  %2039 = vmatpush1.msra.mxu0 0.0
  %2040 = vmatprep.subr.mxu0 0.0
  %2041 = vmatpush1.msra.mxu0 0.0
  %2042 = vmatprep.subr.mxu0 0.0
  %2043 = vmatpush1.msra.mxu0 0.0
  %2044 = vmatprep.subr.mxu0 0.0
  %2045 = vmatpush1.msra.mxu0 0.0
  %2046 = vmatprep.subr.mxu0 0.0
  %2047 = vmatpush1.msra.mxu0 0.0
  %2048 = vmatprep.subr.mxu0 0.0
  %2049 = vmatpush1.msra.mxu0 0.0
  %2050 = vmatprep.mubr.f32.mxu0 0.0
  %2051 = vmatmul.mubr.f32.gmra.mrb[0].mxu0 %v1984
  %v2052 = vpop.f32.mrb[0].mxu0
  %v2053 = vadd.f32 0.0, %v2052
  %v2054 = vpop.f32.mrb[0].mxu0
  %2055 = vdwg.mxu0
  %v2056 = vld [vmem:[%s5] sm:$0xff]
  %v2057 = vld [vmem:[%s5 + $0x8] sm:$0xff]
  %v2058 = vld [vmem:[%s5 + $0x10] sm:$0xff]
  %v2059 = vld [vmem:[%s5 + $0x18] sm:$0xff]
  %v2060 = vld [vmem:[%s5 + $0x20] sm:$0xff]
  %v2061 = vld [vmem:[%s5 + $0x28] sm:$0xff]
  %v2062 = vld [vmem:[%s5 + $0x30] sm:$0xff]
  %v2063 = vld [vmem:[%s5 + $0x38] sm:$0xff]
  %v2064 = vld [vmem:[%s5 + $0x40] sm:$0xff]
  %v2065 = vld [vmem:[%s5 + $0x48] sm:$0xff]
  %v2066 = vld [vmem:[%s5 + $0x50] sm:$0xff]
  %v2067 = vld [vmem:[%s5 + $0x58] sm:$0xff]
  %v2068 = vld [vmem:[%s5 + $0x60] sm:$0xff]
  %v2069 = vld [vmem:[%s5 + $0x68] sm:$0xff]
  %v2070 = vld [vmem:[%s5 + $0x70] sm:$0xff]
  %v2071 = vld [vmem:[%s5 + $0x78] sm:$0xff]
  %v2072 = vld [vmem:[%s5 + $0x80] sm:$0xff]
  %v2073 = vld [vmem:[%s5 + $0x88] sm:$0xff]
  %v2074 = vld [vmem:[%s5 + $0x90] sm:$0xff]
  %v2075 = vld [vmem:[%s5 + $0x98] sm:$0xff]
  %v2076 = vld [vmem:[%s5 + $0xa0] sm:$0xff]
  %v2077 = vld [vmem:[%s5 + $0xa8] sm:$0xff]
  %v2078 = vld [vmem:[%s5 + $0xb0] sm:$0xff]
  %v2079 = vld [vmem:[%s5 + $0xb8] sm:$0xff]
  %v2080 = vld [vmem:[%s5 + $0xc0] sm:$0xff]
  %v2081 = vld [vmem:[%s5 + $0xc8] sm:$0xff]
  %v2082 = vld [vmem:[%s5 + $0xd0] sm:$0xff]
  %v2083 = vld [vmem:[%s5 + $0xd8] sm:$0xff]
  %v2084 = vld [vmem:[%s5 + $0xe0] sm:$0xff]
  %v2085 = vld [vmem:[%s5 + $0xe8] sm:$0xff]
  %v2086 = vld [vmem:[%s5 + $0xf0] sm:$0xff]
  %v2087 = vld [vmem:[%s5 + $0xf8] sm:$0xff]
  %2088 = vmatprep.subr.mxu0 0.0
  %2089 = vmatpush1.msra.mxu0 %v2072
  %2090 = vmatprep.subr.mxu0 0.0
  %2091 = vmatpush1.msra.mxu0 %v2073
  %2092 = vmatprep.subr.mxu0 0.0
  %2093 = vmatpush1.msra.mxu0 %v2074
  %2094 = vmatprep.subr.mxu0 0.0
  %2095 = vmatpush1.msra.mxu0 %v2075
  %2096 = vmatprep.subr.mxu0 0.0
  %2097 = vmatpush1.msra.mxu0 %v2076
  %2098 = vmatprep.subr.mxu0 0.0
  %2099 = vmatpush1.msra.mxu0 %v2077
  %2100 = vmatprep.subr.mxu0 0.0
  %2101 = vmatpush1.msra.mxu0 %v2078
  %2102 = vmatprep.subr.mxu0 0.0
  %2103 = vmatpush1.msra.mxu0 %v2079
  %2104 = vmatprep.subr.mxu0 0.0
  %2105 = vmatpush1.msra.mxu0 %v2080
  %2106 = vmatprep.subr.mxu0 0.0
  %2107 = vmatpush1.msra.mxu0 %v2081
  %2108 = vmatprep.subr.mxu0 0.0
  %2109 = vmatpush1.msra.mxu0 %v2082
  %2110 = vmatprep.subr.mxu0 0.0
  %2111 = vmatpush1.msra.mxu0 %v2083
  %2112 = vmatprep.subr.mxu0 0.0
  %2113 = vmatpush1.msra.mxu0 %v2084
  %2114 = vmatprep.subr.mxu0 0.0
  %2115 = vmatpush1.msra.mxu0 %v2085
  %2116 = vmatprep.subr.mxu0 0.0
  %2117 = vmatpush1.msra.mxu0 %v2086
  %2118 = vmatprep.subr.mxu0 0.0
  %2119 = vmatpush1.msra.mxu0 %v2087
  %2120 = vmatprep.subr.mxu0 0.0
  %2121 = vmatpush1.msra.mxu0 0.0
  %2122 = vmatprep.subr.mxu0 0.0
  %2123 = vmatpush1.msra.mxu0 0.0
  %2124 = vmatprep.subr.mxu0 0.0
  %2125 = vmatpush1.msra.mxu0 0.0
  %2126 = vmatprep.subr.mxu0 0.0
  %2127 = vmatpush1.msra.mxu0 0.0
  %2128 = vmatprep.subr.mxu0 0.0
  %2129 = vmatpush1.msra.mxu0 0.0
  %2130 = vmatprep.subr.mxu0 0.0
  %2131 = vmatpush1.msra.mxu0 0.0
  %2132 = vmatprep.subr.mxu0 0.0
  %2133 = vmatpush1.msra.mxu0 0.0
  %2134 = vmatprep.subr.mxu0 0.0
  %2135 = vmatpush1.msra.mxu0 0.0
  %2136 = vmatprep.subr.mxu0 0.0
  %2137 = vmatpush1.msra.mxu0 0.0
  %2138 = vmatprep.subr.mxu0 0.0
  %2139 = vmatpush1.msra.mxu0 0.0
  %2140 = vmatprep.subr.mxu0 0.0
  %2141 = vmatpush1.msra.mxu0 0.0
  %2142 = vmatprep.subr.mxu0 0.0
  %2143 = vmatpush1.msra.mxu0 0.0
  %2144 = vmatprep.subr.mxu0 0.0
  %2145 = vmatpush1.msra.mxu0 0.0
  %2146 = vmatprep.subr.mxu0 0.0
  %2147 = vmatpush1.msra.mxu0 0.0
  %2148 = vmatprep.subr.mxu0 0.0
  %2149 = vmatpush1.msra.mxu0 0.0
  %2150 = vmatprep.subr.mxu0 0.0
  %2151 = vmatpush1.msra.mxu0 0.0
  %2152 = vmatprep.mubr.f32.mxu0 0.0
  %2153 = vmatmul.mubr.f32.gmra.mrb[0].mxu0 %v2053
  %v2154 = vpop.f32.mrb[0].mxu0
  %v2155 = vadd.f32 0.0, %v2154
  %v2156 = vpop.f32.mrb[0].mxu0
  %2157 = vdwg.mxu0
  %2158 = vmatprep.subr.mxu0 0.0
  %2159 = vmatpush1.msra.mxu0 %v2056
  %2160 = vmatprep.subr.mxu0 0.0
  %2161 = vmatpush1.msra.mxu0 %v2057
  %2162 = vmatprep.subr.mxu0 0.0
  %2163 = vmatpush1.msra.mxu0 %v2058
  %2164 = vmatprep.subr.mxu0 0.0
  %2165 = vmatpush1.msra.mxu0 %v2059
  %2166 = vmatprep.subr.mxu0 0.0
  %2167 = vmatpush1.msra.mxu0 %v2060
  %2168 = vmatprep.subr.mxu0 0.0
  %2169 = vmatpush1.msra.mxu0 %v2061
  %2170 = vmatprep.subr.mxu0 0.0
  %2171 = vmatpush1.msra.mxu0 %v2062
  %2172 = vmatprep.subr.mxu0 0.0
  %2173 = vmatpush1.msra.mxu0 %v2063
  %2174 = vmatprep.subr.mxu0 0.0
  %2175 = vmatpush1.msra.mxu0 %v2064
  %2176 = vmatprep.subr.mxu0 0.0
  %2177 = vmatpush1.msra.mxu0 %v2065
  %2178 = vmatprep.subr.mxu0 0.0
  %2179 = vmatpush1.msra.mxu0 %v2066
  %2180 = vmatprep.subr.mxu0 0.0
  %2181 = vmatpush1.msra.mxu0 %v2067
  %2182 = vmatprep.subr.mxu0 0.0
  %2183 = vmatpush1.msra.mxu0 %v2068
  %2184 = vmatprep.subr.mxu0 0.0
  %2185 = vmatpush1.msra.mxu0 %v2069
  %2186 = vmatprep.subr.mxu0 0.0
  %2187 = vmatpush1.msra.mxu0 %v2070
  %2188 = vmatprep.subr.mxu0 0.0
  %2189 = vmatpush1.msra.mxu0 %v2071
  %2190 = vmatprep.subr.mxu0 0.0
  %2191 = vmatpush1.msra.mxu0 0.0
  %2192 = vmatprep.subr.mxu0 0.0
  %2193 = vmatpush1.msra.mxu0 0.0
  %2194 = vmatprep.subr.mxu0 0.0
  %2195 = vmatpush1.msra.mxu0 0.0
  %2196 = vmatprep.subr.mxu0 0.0
  %2197 = vmatpush1.msra.mxu0 0.0
  %2198 = vmatprep.subr.mxu0 0.0
  %2199 = vmatpush1.msra.mxu0 0.0
  %2200 = vmatprep.subr.mxu0 0.0
  %2201 = vmatpush1.msra.mxu0 0.0
  %2202 = vmatprep.subr.mxu0 0.0
  %2203 = vmatpush1.msra.mxu0 0.0
  %2204 = vmatprep.subr.mxu0 0.0
  %2205 = vmatpush1.msra.mxu0 0.0
  %2206 = vmatprep.subr.mxu0 0.0
  %2207 = vmatpush1.msra.mxu0 0.0
  %2208 = vmatprep.subr.mxu0 0.0
  %2209 = vmatpush1.msra.mxu0 0.0
  %2210 = vmatprep.subr.mxu0 0.0
  %2211 = vmatpush1.msra.mxu0 0.0
  %2212 = vmatprep.subr.mxu0 0.0
  %2213 = vmatpush1.msra.mxu0 0.0
  %2214 = vmatprep.subr.mxu0 0.0
  %2215 = vmatpush1.msra.mxu0 0.0
  %2216 = vmatprep.subr.mxu0 0.0
  %2217 = vmatpush1.msra.mxu0 0.0
  %2218 = vmatprep.subr.mxu0 0.0
  %2219 = vmatpush1.msra.mxu0 0.0
  %2220 = vmatprep.subr.mxu0 0.0
  %2221 = vmatpush1.msra.mxu0 0.0
  %2222 = vmatprep.mubr.f32.mxu0 0.0
  %2223 = vmatmul.mubr.f32.gmra.mrb[0].mxu0 %v1974
  %v2224 = vpop.f32.mrb[0].mxu0
  %v2225 = vadd.f32 %v2155, %v2224
  %v2226 = vpop.f32.mrb[0].mxu0
  %2227 = vdwg.mxu0
  %v2228 = vld [vmem:[%s2] sm:$0xff]
  %v2229 = vld [vmem:[%s5 + $0x100] sm:$0xff]
  %v2230 = vld [vmem:[%s5 + $0x108] sm:$0xff]
  %v2231 = vld [vmem:[%s5 + $0x110] sm:$0xff]
  %v2232 = vld [vmem:[%s5 + $0x118] sm:$0xff]
  %v2233 = vld [vmem:[%s5 + $0x120] sm:$0xff]
  %v2234 = vld [vmem:[%s5 + $0x128] sm:$0xff]
  %v2235 = vld [vmem:[%s5 + $0x130] sm:$0xff]
  %v2236 = vld [vmem:[%s5 + $0x138] sm:$0xff]
  %v2237 = vld [vmem:[%s5 + $0x140] sm:$0xff]
  %v2238 = vld [vmem:[%s5 + $0x148] sm:$0xff]
  %v2239 = vld [vmem:[%s5 + $0x150] sm:$0xff]
  %v2240 = vld [vmem:[%s5 + $0x158] sm:$0xff]
  %v2241 = vld [vmem:[%s5 + $0x160] sm:$0xff]
  %v2242 = vld [vmem:[%s5 + $0x168] sm:$0xff]
  %v2243 = vld [vmem:[%s5 + $0x170] sm:$0xff]
  %v2244 = vld [vmem:[%s5 + $0x178] sm:$0xff]
  %2245 = vmatprep.subr.mxu0 0.0
  %2246 = vmatpush1.msra.mxu0 %v2229
  %2247 = vmatprep.subr.mxu0 0.0
  %2248 = vmatpush1.msra.mxu0 %v2230
  %2249 = vmatprep.subr.mxu0 0.0
  %2250 = vmatpush1.msra.mxu0 %v2231
  %2251 = vmatprep.subr.mxu0 0.0
  %2252 = vmatpush1.msra.mxu0 %v2232
  %2253 = vmatprep.subr.mxu0 0.0
  %2254 = vmatpush1.msra.mxu0 %v2233
  %2255 = vmatprep.subr.mxu0 0.0
  %2256 = vmatpush1.msra.mxu0 %v2234
  %2257 = vmatprep.subr.mxu0 0.0
  %2258 = vmatpush1.msra.mxu0 %v2235
  %2259 = vmatprep.subr.mxu0 0.0
  %2260 = vmatpush1.msra.mxu0 %v2236
  %2261 = vmatprep.subr.mxu0 0.0
  %2262 = vmatpush1.msra.mxu0 %v2237
  %2263 = vmatprep.subr.mxu0 0.0
  %2264 = vmatpush1.msra.mxu0 %v2238
  %2265 = vmatprep.subr.mxu0 0.0
  %2266 = vmatpush1.msra.mxu0 %v2239
  %2267 = vmatprep.subr.mxu0 0.0
  %2268 = vmatpush1.msra.mxu0 %v2240
  %2269 = vmatprep.subr.mxu0 0.0
  %2270 = vmatpush1.msra.mxu0 %v2241
  %2271 = vmatprep.subr.mxu0 0.0
  %2272 = vmatpush1.msra.mxu0 %v2242
  %2273 = vmatprep.subr.mxu0 0.0
  %2274 = vmatpush1.msra.mxu0 %v2243
  %2275 = vmatprep.subr.mxu0 0.0
  %2276 = vmatpush1.msra.mxu0 %v2244
  %2277 = vmatprep.subr.mxu0 0.0
  %2278 = vmatpush1.msra.mxu0 0.0
  %2279 = vmatprep.subr.mxu0 0.0
  %2280 = vmatpush1.msra.mxu0 0.0
  %2281 = vmatprep.subr.mxu0 0.0
  %2282 = vmatpush1.msra.mxu0 0.0
  %2283 = vmatprep.subr.mxu0 0.0
  %2284 = vmatpush1.msra.mxu0 0.0
  %2285 = vmatprep.subr.mxu0 0.0
  %2286 = vmatpush1.msra.mxu0 0.0
  %2287 = vmatprep.subr.mxu0 0.0
  %2288 = vmatpush1.msra.mxu0 0.0
  %2289 = vmatprep.subr.mxu0 0.0
  %2290 = vmatpush1.msra.mxu0 0.0
  %2291 = vmatprep.subr.mxu0 0.0
  %2292 = vmatpush1.msra.mxu0 0.0
  %2293 = vmatprep.subr.mxu0 0.0
  %2294 = vmatpush1.msra.mxu0 0.0
  %2295 = vmatprep.subr.mxu0 0.0
  %2296 = vmatpush1.msra.mxu0 0.0
  %2297 = vmatprep.subr.mxu0 0.0
  %2298 = vmatpush1.msra.mxu0 0.0
  %2299 = vmatprep.subr.mxu0 0.0
  %2300 = vmatpush1.msra.mxu0 0.0
  %2301 = vmatprep.subr.mxu0 0.0
  %2302 = vmatpush1.msra.mxu0 0.0
  %2303 = vmatprep.subr.mxu0 0.0
  %2304 = vmatpush1.msra.mxu0 0.0
  %2305 = vmatprep.subr.mxu0 0.0
  %2306 = vmatpush1.msra.mxu0 0.0
  %2307 = vmatprep.subr.mxu0 0.0
  %2308 = vmatpush1.msra.mxu0 0.0
  %2309 = vmatprep.mubr.f32.mxu0 0.0
  %2310 = vmatmul.mubr.f32.gmra.mrb[0].mxu0 %v2228
  %v2311 = vpop.f32.mrb[0].mxu0
  %v2312 = vadd.f32 0.0, %v2311
  %v2313 = vpop.f32.mrb[0].mxu0
  %2314 = vdwg.mxu0
  %v2315 = vadd.f32 %v2225, %v2312
  %v2316 = vld [vmem:[%s5 + $0x200] sm:$0x1]
  %v2317 = vlaneseq
  %v2318 = vshrl.u32 %v2317, 7
  %v2319 = vsub.s32 0, %v2318
  %v2320 = vrot.slane %v2316, %v2319
  %v2321 = vadd.f32 %v2315, %v2320
  %v2322 = vmax.f32 %v2321, 0.0
  %v2323 = vld [vmem:[%s5 + $0x180] sm:$0xff]
  %v2324 = vld [vmem:[%s5 + $0x188] sm:$0xff]
  %v2325 = vld [vmem:[%s5 + $0x190] sm:$0xff]
  %v2326 = vld [vmem:[%s5 + $0x198] sm:$0xff]
  %v2327 = vld [vmem:[%s5 + $0x1a0] sm:$0xff]
  %v2328 = vld [vmem:[%s5 + $0x1a8] sm:$0xff]
  %v2329 = vld [vmem:[%s5 + $0x1b0] sm:$0xff]
  %v2330 = vld [vmem:[%s5 + $0x1b8] sm:$0xff]
  %v2331 = vld [vmem:[%s5 + $0x1c0] sm:$0xff]
  %v2332 = vld [vmem:[%s5 + $0x1c8] sm:$0xff]
  %v2333 = vld [vmem:[%s5 + $0x1d0] sm:$0xff]
  %v2334 = vld [vmem:[%s5 + $0x1d8] sm:$0xff]
  %v2335 = vld [vmem:[%s5 + $0x1e0] sm:$0xff]
  %v2336 = vld [vmem:[%s5 + $0x1e8] sm:$0xff]
  %v2337 = vld [vmem:[%s5 + $0x1f0] sm:$0xff]
  %v2338 = vld [vmem:[%s5 + $0x1f8] sm:$0xff]
  %v2339 = vld [vmem:[%s5 + $0x208] sm:$0x1]
  %v2340 = vlaneseq
  %v2341 = vshrl.u32 %v2340, 7
  %v2342 = vsub.s32 0, %v2341
  %v2343 = vrot.slane %v2339, %v2342
  %2344 = vmatprep.subr.mxu0 0.0
  %2345 = vmatpush1.msra.mxu0 %v2323
  %2346 = vmatprep.subr.mxu0 0.0
  %2347 = vmatpush1.msra.mxu0 %v2324
  %2348 = vmatprep.subr.mxu0 0.0
  %2349 = vmatpush1.msra.mxu0 %v2325
  %2350 = vmatprep.subr.mxu0 0.0
  %2351 = vmatpush1.msra.mxu0 %v2326
  %2352 = vmatprep.subr.mxu0 0.0
  %2353 = vmatpush1.msra.mxu0 %v2327
  %2354 = vmatprep.subr.mxu0 0.0
  %2355 = vmatpush1.msra.mxu0 %v2328
  %2356 = vmatprep.subr.mxu0 0.0
  %2357 = vmatpush1.msra.mxu0 %v2329
  %2358 = vmatprep.subr.mxu0 0.0
  %2359 = vmatpush1.msra.mxu0 %v2330
  %2360 = vmatprep.subr.mxu0 0.0
  %2361 = vmatpush1.msra.mxu0 %v2331
  %2362 = vmatprep.subr.mxu0 0.0
  %2363 = vmatpush1.msra.mxu0 %v2332
  %2364 = vmatprep.subr.mxu0 0.0
  %2365 = vmatpush1.msra.mxu0 %v2333
  %2366 = vmatprep.subr.mxu0 0.0
  %2367 = vmatpush1.msra.mxu0 %v2334
  %2368 = vmatprep.subr.mxu0 0.0
  %2369 = vmatpush1.msra.mxu0 %v2335
  %2370 = vmatprep.subr.mxu0 0.0
  %2371 = vmatpush1.msra.mxu0 %v2336
  %2372 = vmatprep.subr.mxu0 0.0
  %2373 = vmatpush1.msra.mxu0 %v2337
  %2374 = vmatprep.subr.mxu0 0.0
  %2375 = vmatpush1.msra.mxu0 %v2338
  %2376 = vmatprep.subr.mxu0 0.0
  %2377 = vmatpush1.msra.mxu0 0.0
  %2378 = vmatprep.subr.mxu0 0.0
  %2379 = vmatpush1.msra.mxu0 0.0
  %2380 = vmatprep.subr.mxu0 0.0
  %2381 = vmatpush1.msra.mxu0 0.0
  %2382 = vmatprep.subr.mxu0 0.0
  %2383 = vmatpush1.msra.mxu0 0.0
  %2384 = vmatprep.subr.mxu0 0.0
  %2385 = vmatpush1.msra.mxu0 0.0
  %2386 = vmatprep.subr.mxu0 0.0
  %2387 = vmatpush1.msra.mxu0 0.0
  %2388 = vmatprep.subr.mxu0 0.0
  %2389 = vmatpush1.msra.mxu0 0.0
  %2390 = vmatprep.subr.mxu0 0.0
  %2391 = vmatpush1.msra.mxu0 0.0
  %2392 = vmatprep.subr.mxu0 0.0
  %2393 = vmatpush1.msra.mxu0 0.0
  %2394 = vmatprep.subr.mxu0 0.0
  %2395 = vmatpush1.msra.mxu0 0.0
  %2396 = vmatprep.subr.mxu0 0.0
  %2397 = vmatpush1.msra.mxu0 0.0
  %2398 = vmatprep.subr.mxu0 0.0
  %2399 = vmatpush1.msra.mxu0 0.0
  %2400 = vmatprep.subr.mxu0 0.0
  %2401 = vmatpush1.msra.mxu0 0.0
  %2402 = vmatprep.subr.mxu0 0.0
  %2403 = vmatpush1.msra.mxu0 0.0
  %2404 = vmatprep.subr.mxu0 0.0
  %2405 = vmatpush1.msra.mxu0 0.0
  %2406 = vmatprep.subr.mxu0 0.0
  %2407 = vmatpush1.msra.mxu0 0.0
  %2408 = vmatprep.mubr.f32.mxu0 0.0
  %2409 = vmatmul.mubr.f32.gmra.mrb[0].mxu0 %v2322
  %v2410 = vpop.f32.mrb[0].mxu0
  %v2411 = vadd.f32 %v2343, %v2410
  %v2412 = vpop.f32.mrb[0].mxu0
  %2413 = vdwg.mxu0
  %2414 = vst [vmem:[%s6] sm:$0xff] %v2411
  // Predicated region
  $region26: #{oracle_forward.1} parent=0 // pred_check
    _
  $region27: #{oracle_forward.1} parent=0 // pred_check_branch
    %2416 = sbr.rel (0) target = $region29
  $region28: #{oracle_forward.1} parent=0 // pred_region
    _
  $region29: #{oracle_forward.1} parent=0 // pred_fallthru
    _
  // Predicated region
  $region30: #{oracle_forward.1} parent=0 // pred_check
    _
  $region31: #{oracle_forward.1} parent=0 // pred_check_branch
    %2418 = sbr.rel (0) target = $region33
  $region32: #{oracle_forward.1} parent=0 // pred_region
    _
  $region33: #{oracle_forward.1} parent=0 // pred_fallthru
    _

</llo_original>
